<compile_context>
chip_gen: v7x
topology: tpu7x:2x2x1
jax: 0.10.0
libtpu: 0.0.40
codegen_flags: <defaults>
</compile_context>

<pallas_src>
import jax
import jax.numpy as jnp
from jax import lax
from jax.experimental import pallas as pl
from jax.experimental.pallas import tpu as pltpu


# Contract the last dim of both operands (x @ W.T without materializing W.T).
_CONTRACT_LAST = (((1,), (1,)), ((), ()))


def mlp_attn_kernel(dec_ref, enc_ref, w1d_ref, w1e_ref, b1_ref, w2_ref, b2_ref,
                    out_ref, dproj_ref):
    # dec_ref : (1, tm, D)   enc_ref : (1, tn, D)
    # w1d_ref : (D, D)       w1e_ref : (D, D)      (split halves of W1 (D, 2D))
    # b1_ref  : (1, D)       w2_ref  : (1, D)      b2_ref : (1,) in SMEM
    # out_ref : (1, tm, tn)  dproj_ref (scratch): (tm, D) f32
    j = pl.program_id(2)

    tm = out_ref.shape[1]
    tn = out_ref.shape[2]
    D = w2_ref.shape[1]

    # Decoder-side projection (+ b1) is independent of the T_src tile: compute
    # it once per (b, i) and keep it resident in VMEM scratch.  Only correct
    # because the T_src axis (grid axis 2) is innermost and "arbitrary".
    @pl.when(j == 0)
    def _():
        dproj = lax.dot_general(dec_ref[0], w1d_ref[...], _CONTRACT_LAST,
                                preferred_element_type=jnp.float32)      # (tm, D)
        dproj_ref[...] = dproj + b1_ref[...]

    # Encoder-side projection, transposed so tn (a multiple of 128) is the
    # lane dim:  eprojT[d, s] = (enc[s] @ W1_enc.T)[d].   (MXU, f32 acc.)
    eprojT = lax.dot_general(w1e_ref[...], enc_ref[0], _CONTRACT_LAST,
                             preferred_element_type=jnp.float32)         # (D, tn)

    dproj = dproj_ref[...]                                               # (tm, D)
    w2 = w2_ref[...]                                                     # (1, D)

    # score[t, s] = sum_d w2[d] * relu(dproj[t, d] + eprojT[d, s]) + b2
    # Fused and chunked over D in sublane-sized pieces: the (tm, tn, D)
    # intermediate of the naive formulation never exists, only (tm, cs, tn).
    cs = 8 if D >= 8 else D
    acc = jnp.zeros((tm, tn), jnp.float32)
    for d0 in range(0, D, cs):                       # static unroll (D known)
        cur = min(cs, D - d0)
        dchunk = dproj[:, d0:d0 + cur]                                   # (tm, cur)
        echunk = eprojT[d0:d0 + cur, :]                                  # (cur, tn)
        h = jnp.maximum(dchunk[:, :, None] + echunk[None, :, :], 0.0)    # (tm, cur, tn)
        w2c = w2[:, d0:d0 + cur][:, :, None]                             # (1, cur, 1)
        acc = acc + jnp.sum(h * w2c, axis=1)                             # (tm, tn)

    out_ref[0] = (acc + b2_ref[0]).astype(out_ref.dtype)


def _pick(dim, preferred, gran):
    """Largest tile <= preferred that divides `dim` and is a multiple of `gran`
    (falls back to the full dim, which is always legal)."""
    if dim <= preferred:
        return dim
    t = (preferred // gran) * gran
    while t >= gran:
        if dim % t == 0:
            return t
        t -= gran
    # TODO(synk): use a pl.cdiv grid with a masked remainder tile instead of
    # this full-dimension fallback for awkward (prime-ish) T_tgt / T_src.
    return dim


def _vmem_estimate(tm, tn, d, elt=4):
    cs = 8 if d >= 8 else d
    return elt * (
        2 * (tm * d + tn * d + tm * tn)   # dec / enc / out tiles (double-buffered)
        + (2 * d * d + 2 * d)             # W1 halves + b1 + w2 (single-buffered)
        + tm * d                          # dec_proj scratch
        + d * tn                          # eprojT
        + 3 * tm * cs * tn                # chunked elementwise working set
    )


def _pick_tiles(t_tgt, t_src, d, batch, budget_bytes=40 << 20):
    tm = _pick(t_tgt, 256, 8)
    # v7x megacore: the "parallel" grid axes (B, T_tgt-tiles) must expose at
    # least 2 independent tiles or one TensorCore idles.
    while batch * (t_tgt // tm) < 2 and tm > 8:
        smaller = _pick(t_tgt, tm // 2, 8)
        if smaller >= tm:
            break
        tm = smaller
    # Output lane dim (tn) stays a multiple of 128 so stores are unmasked.
    tn = _pick(t_src, 512, 128)
    # Keep the working set inside a conservative VMEM budget (v7x: 64 MiB/TC).
    while _vmem_estimate(tm, tn, d) > budget_bytes and tn > 128:
        smaller = _pick(t_src, tn // 2, 128)
        if smaller >= tn:
            break
        tn = smaller
    while _vmem_estimate(tm, tn, d) > budget_bytes and tm > 8:
        smaller = _pick(t_tgt, tm // 2, 8)
        if smaller >= tm:
            break
        tm = smaller
    return tm, tn


def mlp_attention(decoder_states, encoder_states, w1, b1, w2, b2):
    """decoder_states: (B, T_tgt, D), encoder_states: (B, T_src, D),
    w1: (D, 2D), b1: (D,), w2: (1, D), b2: (1,)  ->  attn: (B, T_tgt, T_src)."""
    B, T_tgt, D = decoder_states.shape
    _, T_src, _ = encoder_states.shape
    assert w1.shape == (D, 2 * D)

    # PyTorch concatenates (encoder, decoder): the first D input columns hit
    # the encoder features, the last D the decoder features.
    w1_enc = w1[:, :D].astype(jnp.float32)
    w1_dec = w1[:, D:].astype(jnp.float32)
    b1_2d = b1.reshape(1, D).astype(jnp.float32)
    w2_2d = w2.reshape(1, D).astype(jnp.float32)
    b2_1d = b2.reshape(1).astype(jnp.float32)

    tm, tn = _pick_tiles(T_tgt, T_src, D, B)
    grid = (B, T_tgt // tm, T_src // tn)

    # Explicit VMEM budget with headroom, capped at 48 MiB so it stays well
    # inside v7x's 64 MiB per-TensorCore VMEM (v5e/v6e have 128 MiB).
    vmem_limit = int(min(max(_vmem_estimate(tm, tn, D) + (4 << 20), 32 << 20),
                         48 << 20))

    const = lambda b, i, j: (0, 0)
    invariant = dict(pipeline_mode=pl.Buffered(1))   # constant index_map: never re-DMA'd

    return pl.pallas_call(
        mlp_attn_kernel,
        out_shape=jax.ShapeDtypeStruct((B, T_tgt, T_src), decoder_states.dtype),
        grid_spec=pltpu.PrefetchScalarGridSpec(
            num_scalar_prefetch=0,
            grid=grid,
            in_specs=[
                pl.BlockSpec((1, tm, D), lambda b, i, j: (b, i, 0)),    # decoder tile
                pl.BlockSpec((1, tn, D), lambda b, i, j: (b, j, 0)),    # encoder tile
                pl.BlockSpec((D, D), const, **invariant),               # W1 (decoder half)
                pl.BlockSpec((D, D), const, **invariant),               # W1 (encoder half)
                pl.BlockSpec((1, D), const, **invariant),               # b1
                pl.BlockSpec((1, D), const, **invariant),               # w2
                pl.BlockSpec(memory_space=pltpu.MemorySpace.SMEM),      # b2 (scalar)
            ],
            out_specs=pl.BlockSpec((1, tm, tn), lambda b, i, j: (b, i, j)),
            scratch_shapes=[pltpu.VMEM((tm, D), jnp.float32)],
        ),
        compiler_params=pltpu.CompilerParams(
            # B / T_tgt-tile axes shard across TensorCores (v7x megacore); the
            # T_src-tile axis MUST stay innermost + "arbitrary" for the
            # dec_proj scratch cache to remain valid.
            dimension_semantics=("parallel", "parallel", "arbitrary"),
            vmem_limit_bytes=vmem_limit,
        ),
    )(decoder_states, encoder_states, w1_dec, w1_enc, b1_2d, w2_2d, b2_1d)


if __name__ == "__main__":
    key = jax.random.PRNGKey(0)
    kd, ke, kw1, kb1, kw2, kb2 = jax.random.split(key, 6)

    B, T_tgt, T_src, D = 2, 8, 512, 32

    decoder_states = jax.random.normal(kd, (B, T_tgt, D), dtype=jnp.float32)
    encoder_states = jax.random.normal(ke, (B, T_src, D), dtype=jnp.float32)
    w1 = jax.random.normal(kw1, (D, 2 * D), dtype=jnp.float32) * (1.0 / jnp.sqrt(2 * D))
    b1 = jax.random.normal(kb1, (D,), dtype=jnp.float32) * 0.1
    w2 = jax.random.normal(kw2, (1, D), dtype=jnp.float32) * (1.0 / jnp.sqrt(D))
    b2 = jax.random.normal(kb2, (1,), dtype=jnp.float32) * 0.1

    attn = mlp_attention(decoder_states, encoder_states, w1, b1, w2, b2)
    attn = jax.block_until_ready(attn)

    # Reference: mirror the PyTorch forward exactly (expand -> concat -> MLP).
    enc_exp = jnp.broadcast_to(encoder_states[:, None, :, :], (B, T_tgt, T_src, D))
    dec_exp = jnp.broadcast_to(decoder_states[:, :, None, :], (B, T_tgt, T_src, D))
    mlp_in = jnp.concatenate(
        [enc_exp.reshape(-1, D), dec_exp.reshape(-1, D)], axis=1)        # (B*T*S, 2D)
    hid = jnp.maximum(mlp_in @ w1.T + b1, 0.0)
    ref = (hid @ w2.T + b2).reshape(B, T_tgt, T_src)

    assert attn.shape == (B, T_tgt, T_src)
    assert jnp.allclose(attn, ref, atol=1e-3, rtol=1e-3)

    print("KERNEL_OK")
</pallas_src>

<mosaic_0001>
module attributes {stable_mosaic.version = 11 : i64} {
  func.func @mlp_attn_kernel(%arg0: i32, %arg1: i32, %arg2: i32, %arg3: memref<1x8x32xf32, #tpu.memory_space<vmem>>, %arg4: memref<1x512x32xf32, #tpu.memory_space<vmem>>, %arg5: memref<32x32xf32, #tpu.memory_space<vmem>>, %arg6: memref<32x32xf32, #tpu.memory_space<vmem>>, %arg7: memref<1x32xf32, #tpu.memory_space<vmem>>, %arg8: memref<1x32xf32, #tpu.memory_space<vmem>>, %arg9: memref<1xf32, #tpu.memory_space<smem>>, %arg10: memref<1x8x512xf32, #tpu.memory_space<vmem>>, %arg11: memref<8x32xf32, #tpu.memory_space<vmem>>) attributes {dimension_semantics = [#tpu.dimension_semantics<parallel>, #tpu.dimension_semantics<parallel>, #tpu.dimension_semantics<arbitrary>], iteration_bounds = array<i64: 2, 1, 1>, scalar_prefetch = 0 : i64, scratch_operands = 1 : i64, tpu.core_type = #tpu.core_type<tc>, window_params = [{transform_indices = @transform_0, window_bounds = array<i64: 1, 8, 32>}, {transform_indices = @transform_1, window_bounds = array<i64: 1, 512, 32>}, {pipeline_mode = #tpu.pipeline_mode<synchronous>, transform_indices = @transform_2, window_bounds = array<i64: 32, 32>}, {pipeline_mode = #tpu.pipeline_mode<synchronous>, transform_indices = @transform_3, window_bounds = array<i64: 32, 32>}, {pipeline_mode = #tpu.pipeline_mode<synchronous>, transform_indices = @transform_4, window_bounds = array<i64: 1, 32>}, {pipeline_mode = #tpu.pipeline_mode<synchronous>, transform_indices = @transform_5, window_bounds = array<i64: 1, 32>}, {transform_indices = @transform_6, window_bounds = array<i64: 1>}, {transform_indices = @transform_7, window_bounds = array<i64: 1, 8, 512>}]} {
    %c0_i32 = arith.constant 0 : i32
    %0 = arith.cmpi eq, %arg2, %c0_i32 : i32
    %1 = arith.extui %0 : i1 to i32
    %c0_i32_0 = arith.constant 0 : i32
    %2 = arith.cmpi ne, %1, %c0_i32_0 : i32
    scf.if %2 {
      %c0_22 = arith.constant 0 : index
      %c0_23 = arith.constant 0 : index
      %c0_24 = arith.constant 0 : index
      %76 = vector.load %arg3[%c0_22, %c0_23, %c0_24] : memref<1x8x32xf32, #tpu.memory_space<vmem>>, vector<1x8x32xf32>
      %77 = vector.shape_cast %76 : vector<1x8x32xf32> to vector<8x32xf32>
      %c0_25 = arith.constant 0 : index
      %c0_26 = arith.constant 0 : index
      %78 = vector.load %arg5[%c0_25, %c0_26] : memref<32x32xf32, #tpu.memory_space<vmem>>, vector<32x32xf32>
      %cst_27 = arith.constant dense<0.000000e+00> : vector<8x32xf32>
      %79 = tpu.matmul %77, %78, %cst_27 {dimension_numbers = #tpu.dot_dimension_numbers<[1], [1], [0], [0], [0, 0, 1, 0], [], []>} : vector<8x32xf32>, vector<32x32xf32>, vector<8x32xf32> -> vector<8x32xf32>
      %c0_28 = arith.constant 0 : index
      %c0_29 = arith.constant 0 : index
      %80 = vector.load %arg7[%c0_28, %c0_29] : memref<1x32xf32, #tpu.memory_space<vmem>>, vector<1x32xf32>
      %81 = vector.broadcast %80 : vector<1x32xf32> to vector<8x32xf32>
      %82 = arith.addf %79, %81 : vector<8x32xf32>
      %c0_30 = arith.constant 0 : index
      %c0_31 = arith.constant 0 : index
      %83 = vector.load %arg11[%c0_30, %c0_31] : memref<8x32xf32, #tpu.memory_space<vmem>>, vector<8x32xf32>
      tpu.vector_store %arg11[%c0_30, %c0_31], %82 {strides = array<i32>} : memref<8x32xf32, #tpu.memory_space<vmem>>, vector<8x32xf32>,
    } else {
    }
    %c0 = arith.constant 0 : index
    %c0_1 = arith.constant 0 : index
    %3 = vector.load %arg6[%c0, %c0_1] : memref<32x32xf32, #tpu.memory_space<vmem>>, vector<32x32xf32>
    %c0_2 = arith.constant 0 : index
    %c0_3 = arith.constant 0 : index
    %c0_4 = arith.constant 0 : index
    %4 = vector.load %arg4[%c0_2, %c0_3, %c0_4] : memref<1x512x32xf32, #tpu.memory_space<vmem>>, vector<1x512x32xf32>
    %5 = vector.shape_cast %4 : vector<1x512x32xf32> to vector<512x32xf32>
    %cst = arith.constant dense<0.000000e+00> : vector<32x512xf32>
    %6 = tpu.matmul %3, %5, %cst {dimension_numbers = #tpu.dot_dimension_numbers<[1], [1], [0], [0], [0, 0, 1, 0], [], []>} : vector<32x32xf32>, vector<512x32xf32>, vector<32x512xf32> -> vector<32x512xf32>
    %c0_5 = arith.constant 0 : index
    %c0_6 = arith.constant 0 : index
    %7 = vector.load %arg11[%c0_5, %c0_6] : memref<8x32xf32, #tpu.memory_space<vmem>>, vector<8x32xf32>
    %c0_7 = arith.constant 0 : index
    %c0_8 = arith.constant 0 : index
    %8 = vector.load %arg8[%c0_7, %c0_8] : memref<1x32xf32, #tpu.memory_space<vmem>>, vector<1x32xf32>
    %cst_9 = arith.constant 0.000000e+00 : f32
    %9 = vector.broadcast %cst_9 : f32 to vector<8x512xf32>
    %10 = vector.extract_strided_slice %7 {offsets = [0, 0], sizes = [8, 8], strides = [1, 1]} : vector<8x32xf32> to vector<8x8xf32>
    %11 = vector.extract_strided_slice %6 {offsets = [0, 0], sizes = [8, 512], strides = [1, 1]} : vector<32x512xf32> to vector<8x512xf32>
    %12 = vector.shape_cast %10 : vector<8x8xf32> to vector<8x8x1xf32>
    %13 = vector.shape_cast %11 : vector<8x512xf32> to vector<1x8x512xf32>
    %14 = vector.broadcast %12 : vector<8x8x1xf32> to vector<8x8x512xf32>
    %15 = vector.broadcast %13 : vector<1x8x512xf32> to vector<8x8x512xf32>
    %16 = arith.addf %14, %15 : vector<8x8x512xf32>
    %cst_10 = arith.constant 0.000000e+00 : f32
    %17 = vector.broadcast %cst_10 : f32 to vector<8x8x512xf32>
    %18 = arith.maximumf %16, %17 : vector<8x8x512xf32>
    %19 = vector.extract_strided_slice %8 {offsets = [0, 0], sizes = [1, 8], strides = [1, 1]} : vector<1x32xf32> to vector<1x8xf32>
    %20 = vector.shape_cast %19 : vector<1x8xf32> to vector<1x8x1xf32>
    %21 = vector.broadcast %20 : vector<1x8x1xf32> to vector<8x8x512xf32>
    %22 = arith.mulf %18, %21 : vector<8x8x512xf32>
    %cst_11 = arith.constant dense<0.000000e+00> : vector<8x512xf32>
    %23 = vector.multi_reduction <add>, %22, %cst_11 [1] : vector<8x8x512xf32> to vector<8x512xf32>
    %24 = arith.addf %9, %23 : vector<8x512xf32>
    %25 = vector.extract_strided_slice %7 {offsets = [0, 8], sizes = [8, 8], strides = [1, 1]} : vector<8x32xf32> to vector<8x8xf32>
    %26 = vector.extract_strided_slice %6 {offsets = [8, 0], sizes = [8, 512], strides = [1, 1]} : vector<32x512xf32> to vector<8x512xf32>
    %27 = vector.shape_cast %25 : vector<8x8xf32> to vector<8x8x1xf32>
    %28 = vector.shape_cast %26 : vector<8x512xf32> to vector<1x8x512xf32>
    %29 = vector.broadcast %27 : vector<8x8x1xf32> to vector<8x8x512xf32>
    %30 = vector.broadcast %28 : vector<1x8x512xf32> to vector<8x8x512xf32>
    %31 = arith.addf %29, %30 : vector<8x8x512xf32>
    %cst_12 = arith.constant 0.000000e+00 : f32
    %32 = vector.broadcast %cst_12 : f32 to vector<8x8x512xf32>
    %33 = arith.maximumf %31, %32 : vector<8x8x512xf32>
    %34 = vector.extract_strided_slice %8 {offsets = [0, 8], sizes = [1, 8], strides = [1, 1]} : vector<1x32xf32> to vector<1x8xf32>
    %35 = vector.shape_cast %34 : vector<1x8xf32> to vector<1x8x1xf32>
    %36 = vector.broadcast %35 : vector<1x8x1xf32> to vector<8x8x512xf32>
    %37 = arith.mulf %33, %36 : vector<8x8x512xf32>
    %cst_13 = arith.constant dense<0.000000e+00> : vector<8x512xf32>
    %38 = vector.multi_reduction <add>, %37, %cst_13 [1] : vector<8x8x512xf32> to vector<8x512xf32>
    %39 = arith.addf %24, %38 : vector<8x512xf32>
    %40 = vector.extract_strided_slice %7 {offsets = [0, 16], sizes = [8, 8], strides = [1, 1]} : vector<8x32xf32> to vector<8x8xf32>
    %41 = vector.extract_strided_slice %6 {offsets = [16, 0], sizes = [8, 512], strides = [1, 1]} : vector<32x512xf32> to vector<8x512xf32>
    %42 = vector.shape_cast %40 : vector<8x8xf32> to vector<8x8x1xf32>
    %43 = vector.shape_cast %41 : vector<8x512xf32> to vector<1x8x512xf32>
    %44 = vector.broadcast %42 : vector<8x8x1xf32> to vector<8x8x512xf32>
    %45 = vector.broadcast %43 : vector<1x8x512xf32> to vector<8x8x512xf32>
    %46 = arith.addf %44, %45 : vector<8x8x512xf32>
    %cst_14 = arith.constant 0.000000e+00 : f32
    %47 = vector.broadcast %cst_14 : f32 to vector<8x8x512xf32>
    %48 = arith.maximumf %46, %47 : vector<8x8x512xf32>
    %49 = vector.extract_strided_slice %8 {offsets = [0, 16], sizes = [1, 8], strides = [1, 1]} : vector<1x32xf32> to vector<1x8xf32>
    %50 = vector.shape_cast %49 : vector<1x8xf32> to vector<1x8x1xf32>
    %51 = vector.broadcast %50 : vector<1x8x1xf32> to vector<8x8x512xf32>
    %52 = arith.mulf %48, %51 : vector<8x8x512xf32>
    %cst_15 = arith.constant dense<0.000000e+00> : vector<8x512xf32>
    %53 = vector.multi_reduction <add>, %52, %cst_15 [1] : vector<8x8x512xf32> to vector<8x512xf32>
    %54 = arith.addf %39, %53 : vector<8x512xf32>
    %55 = vector.extract_strided_slice %7 {offsets = [0, 24], sizes = [8, 8], strides = [1, 1]} : vector<8x32xf32> to vector<8x8xf32>
    %56 = vector.extract_strided_slice %6 {offsets = [24, 0], sizes = [8, 512], strides = [1, 1]} : vector<32x512xf32> to vector<8x512xf32>
    %57 = vector.shape_cast %55 : vector<8x8xf32> to vector<8x8x1xf32>
    %58 = vector.shape_cast %56 : vector<8x512xf32> to vector<1x8x512xf32>
    %59 = vector.broadcast %57 : vector<8x8x1xf32> to vector<8x8x512xf32>
    %60 = vector.broadcast %58 : vector<1x8x512xf32> to vector<8x8x512xf32>
    %61 = arith.addf %59, %60 : vector<8x8x512xf32>
    %cst_16 = arith.constant 0.000000e+00 : f32
    %62 = vector.broadcast %cst_16 : f32 to vector<8x8x512xf32>
    %63 = arith.maximumf %61, %62 : vector<8x8x512xf32>
    %64 = vector.extract_strided_slice %8 {offsets = [0, 24], sizes = [1, 8], strides = [1, 1]} : vector<1x32xf32> to vector<1x8xf32>
    %65 = vector.shape_cast %64 : vector<1x8xf32> to vector<1x8x1xf32>
    %66 = vector.broadcast %65 : vector<1x8x1xf32> to vector<8x8x512xf32>
    %67 = arith.mulf %63, %66 : vector<8x8x512xf32>
    %cst_17 = arith.constant dense<0.000000e+00> : vector<8x512xf32>
    %68 = vector.multi_reduction <add>, %67, %cst_17 [1] : vector<8x8x512xf32> to vector<8x512xf32>
    %69 = arith.addf %54, %68 : vector<8x512xf32>
    %c0_18 = arith.constant 0 : index
    %70 = memref.load %arg9[%c0_18] : memref<1xf32, #tpu.memory_space<smem>>
    %71 = vector.broadcast %70 : f32 to vector<8x512xf32>
    %72 = arith.addf %69, %71 : vector<8x512xf32>
    %c0_19 = arith.constant 0 : index
    %c0_20 = arith.constant 0 : index
    %c0_21 = arith.constant 0 : index
    %73 = vector.load %arg10[%c0_19, %c0_20, %c0_21] : memref<1x8x512xf32, #tpu.memory_space<vmem>>, vector<1x8x512xf32>
    %74 = vector.shape_cast %73 : vector<1x8x512xf32> to vector<8x512xf32>
    %75 = vector.shape_cast %72 : vector<8x512xf32> to vector<1x8x512xf32>
    tpu.vector_store %arg10[%c0_19, %c0_20, %c0_21], %75 {strides = array<i32>} : memref<1x8x512xf32, #tpu.memory_space<vmem>>, vector<1x8x512xf32>,
    return
  }
  func.func @transform_0(%arg0: i32, %arg1: i32, %arg2: i32) -> (i32, i32, i32) {
    %c0_i32 = arith.constant 0 : i32
    %c0_i32_0 = arith.constant 0 : i32
    return %arg0, %arg1, %c0_i32 : i32, i32, i32
  }
  func.func @transform_1(%arg0: i32, %arg1: i32, %arg2: i32) -> (i32, i32, i32) {
    %c0_i32 = arith.constant 0 : i32
    %c0_i32_0 = arith.constant 0 : i32
    return %arg0, %arg2, %c0_i32 : i32, i32, i32
  }
  func.func @transform_2(%arg0: i32, %arg1: i32, %arg2: i32) -> (i32, i32) {
    %c0_i32 = arith.constant 0 : i32
    %c0_i32_0 = arith.constant 0 : i32
    %c0_i32_1 = arith.constant 0 : i32
    return %c0_i32, %c0_i32_0 : i32, i32
  }
  func.func @transform_3(%arg0: i32, %arg1: i32, %arg2: i32) -> (i32, i32) {
    %c0_i32 = arith.constant 0 : i32
    %c0_i32_0 = arith.constant 0 : i32
    %c0_i32_1 = arith.constant 0 : i32
    return %c0_i32, %c0_i32_0 : i32, i32
  }
  func.func @transform_4(%arg0: i32, %arg1: i32, %arg2: i32) -> (i32, i32) {
    %c0_i32 = arith.constant 0 : i32
    %c0_i32_0 = arith.constant 0 : i32
    %c0_i32_1 = arith.constant 0 : i32
    return %c0_i32, %c0_i32_0 : i32, i32
  }
  func.func @transform_5(%arg0: i32, %arg1: i32, %arg2: i32) -> (i32, i32) {
    %c0_i32 = arith.constant 0 : i32
    %c0_i32_0 = arith.constant 0 : i32
    %c0_i32_1 = arith.constant 0 : i32
    return %c0_i32, %c0_i32_0 : i32, i32
  }
  func.func @transform_6(%arg0: i32, %arg1: i32, %arg2: i32) -> i32 {
    %c0_i32 = arith.constant 0 : i32
    %c0_i32_0 = arith.constant 0 : i32
    return %c0_i32 : i32
  }
  func.func @transform_7(%arg0: i32, %arg1: i32, %arg2: i32) -> (i32, i32, i32) {
    %c0_i32 = arith.constant 0 : i32
    return %arg0, %arg1, %arg2 : i32, i32, i32
  }
}

</mosaic_0001>

<llo_original>
// kernel: tpu_custom_call.1
$region0: #{tpu_custom_call.1}
  #allocation0 [shape = 'u32[]', space=smem, size = 0x4, offset = 0x4, fixed_abs, tag = 'smem constant byte address 0x4 - core index']
  #allocation1 [shape = 'u32[144,128]{1,0:T(1,128)}', space=vmem, size = 0x12000, scoped, tag = 'internal scratch']
  #allocation2 [shape = 'f32[8,32]{1,0:T(8,128)}', space=vmem, size = 0x1000, scoped, tag = 'scratch operand']
  #allocation3 [shape = 'f32[1]{0:T(128)S(6)}', space=smem, size = 0x200, scoped, tag = 'scoped memory for tpu_custom_call.1']
  %s0 = inlined_call_operand.vmem [shape: f32[2,8,32], index: 0, kind: input, shape index: {}]
  %s1 = inlined_call_operand.vmem [shape: f32[2,512,32], index: 1, kind: input, shape index: {}]
  %s2 = inlined_call_operand.vmem [shape: f32[32,32], index: 2, kind: input, shape index: {}]
  %s3 = inlined_call_operand.vmem [shape: f32[32,32], index: 3, kind: input, shape index: {}]
  %s4 = inlined_call_operand.vmem [shape: f32[1,32], index: 4, kind: input, shape index: {}]
  %s5 = inlined_call_operand.vmem [shape: f32[1,32], index: 5, kind: input, shape index: {}]
  %s6 = inlined_call_operand.<no memory space> [shape: f32[1], index: 6, kind: input, shape index: {}]
  %s7 = inlined_call_operand.hbm [shape: f32[2,8,512], index: 7, kind: output, shape index: {}]
  %s8 = sld [smem:[#allocation0]]
  $region65: #{tpu_custom_call.1} parent=0
    _
  %s10 = ssub.s32 1, %s8
  %s11 = scalar_select 0, %s10, %s8
  %12 = sst [smem:[#allocation3]] %s6
  $region1: #{tpu_custom_call.1} parent=0
    #allocation4 [shape = 'u8[32768]{0}', space=vmem, size = 0x8000, scoped, tag = 'output window, operand 0']
    #allocation5 [shape = 's32[2]{0}', space=sflag, size = 0x8, scoped, tag = 'scoped memory for tpu_custom_call.1']
    %13 = vsyncpa [#allocation5], 0
    %s14 = scalar_lea.sflag [#allocation5], 1
    %15 = vsyncpa %s14, 0
    loop: start=0, step=1, limit=4
    $region2: #{tpu_custom_call.1} parent=1 // loop_pre_header
      _
    $region3: #{tpu_custom_call.1} parent=1 // loop_header
      %s17 = sphi 0, %s21
      %p18 = scmp.ge.s32.totalorder %s17, 4
      %s24 = sphi 0, %s43
      %s25 = sphi 0, %s39
      %s26 = sphi 0, %s35
      %s27 = sphi 0, %s24
      %s28 = sphi 0, %s25
      %s29 = sphi 0, %s26
      %s30 = sphi 0, %s27
      %s31 = sphi 0, %s28
      %s32 = sphi 0, %s29
      %s48 = sphi 0, %s50
      %s51 = sphi 0, %s48
      %s52 = sphi 0, %s51
      %s68 = sphi 0, %s52
      %s76 = sphi 0, %s78
      %s79 = sphi 0, %s76
      %s80 = sphi 0, %s79
      %s96 = sphi 0, %s80
      %s100 = sphi 0, %s100
      %s102 = sphi 0, %s100
      %s103 = sphi 0, %s102
      %s117 = sphi 0, %s103
      %s121 = sphi 0, %s121
      %s123 = sphi 0, %s121
      %s124 = sphi 0, %s123
      %s138 = sphi 0, %s124
      %s142 = sphi 0, %s142
      %s144 = sphi 0, %s142
      %s145 = sphi 0, %s144
      %s159 = sphi 0, %s145
      %s163 = sphi 0, %s163
      %s165 = sphi 0, %s163
      %s166 = sphi 0, %s165
      %s180 = sphi 0, %s166
      %s184 = sphi 0, %s184
      %s186 = sphi 0, %s184
      %s187 = sphi 0, %s186
      %s201 = sphi 0, %s187
      %s211 = sphi 0, %s213
      %s214 = sphi 0, %s211
      %s215 = sphi 0, %s214
      %s231 = sphi 0, %s215
    $region4: #{tpu_custom_call.1} parent=1 // loop_header_branch
      %20 = sbr.rel (%p18) target = $region8
    $region5: #{tpu_custom_call.1} parent=1 // loop_body
      %s22 = ssub.s32 %s17, 1
      %s23 = ssub.s32 %s17, 2
      %s33 = sadd.s32 1, %s26
      %p34 = scmp.ge.s32.totalorder %s33, 1
      %s35 = scalar_select %p34, 0, %s33
      %s36 = sadd.s32 1, %s25
      %s37 = scalar_select %p34, %s36, %s25
      %p38 = scmp.ge.s32.totalorder %s37, 1
      %s39 = scalar_select %p38, 0, %s37
      %s40 = sadd.s32 1, %s24
      %s41 = scalar_select %p38, %s40, %s24
      %p42 = scmp.ge.s32.totalorder %s41, 2
      %s43 = scalar_select %p42, 0, %s41
      %s44 = ssub.s32 %s24, %s43
      %s45 = ssub.s32 %s25, %s39
      %s46 = sor.u32 %s44, %s45
      %p47 = scmp.eq.s32.totalorder %s46, 0
      %s49 = sadd.s32 %s48, 1
      %s50 = scalar_select %p47, %s48, %s49
      %p53 = pneg %p47
      %p54 = scmp.eq.s32.totalorder %s17, 1
      %p55 = por %p53, %p54
      %p56 = scmp.ne.s32.totalorder %s48, %s51
      %p57 = scmp.eq.s32.totalorder %s17, 0
      %p58 = por %p56, %p57
      %p59 = scmp.ne.s32.totalorder %s48, %s51
      %p60 = scmp.eq.s32.totalorder %s22, 1
      %p61 = por %p59, %p60
      %p62 = scmp.ne.s32.totalorder %s51, %s52
      %p63 = scmp.eq.s32.totalorder %s22, 0
      %p64 = por %p62, %p63
      %p65 = scmp.ne.s32.totalorder %s51, %s52
      %p66 = scmp.eq.s32.totalorder %s23, 1
      %p67 = por %p65, %p66
      %p69 = scmp.ne.s32.totalorder %s52, %s68
      %p70 = scmp.eq.s32.totalorder %s23, 0
      %p71 = por %p69, %p70
      %s72 = ssub.s32 %s24, %s43
      %s73 = ssub.s32 %s26, %s35
      %s74 = sor.u32 %s72, %s73
      %p75 = scmp.eq.s32.totalorder %s74, 0
      %s77 = sadd.s32 %s76, 1
      %s78 = scalar_select %p75, %s76, %s77
      %p81 = pneg %p75
      %p82 = scmp.eq.s32.totalorder %s17, 1
      %p83 = por %p81, %p82
      %p84 = scmp.ne.s32.totalorder %s76, %s79
      %p85 = scmp.eq.s32.totalorder %s17, 0
      %p86 = por %p84, %p85
      %p87 = scmp.ne.s32.totalorder %s76, %s79
      %p88 = scmp.eq.s32.totalorder %s22, 1
      %p89 = por %p87, %p88
      %p90 = scmp.ne.s32.totalorder %s79, %s80
      %p91 = scmp.eq.s32.totalorder %s22, 0
      %p92 = por %p90, %p91
      %p93 = scmp.ne.s32.totalorder %s79, %s80
      %p94 = scmp.eq.s32.totalorder %s23, 1
      %p95 = por %p93, %p94
      %p97 = scmp.ne.s32.totalorder %s80, %s96
      %p98 = scmp.eq.s32.totalorder %s23, 0
      %p99 = por %p97, %p98
      %s101 = sadd.s32 %s100, 1
      %p104 = scmp.eq.s32.totalorder %s17, 1
      %p105 = scmp.ne.s32.totalorder %s100, %s102
      %p106 = scmp.eq.s32.totalorder %s17, 0
      %p107 = por %p105, %p106
      %p108 = scmp.ne.s32.totalorder %s100, %s102
      %p109 = scmp.eq.s32.totalorder %s22, 1
      %p110 = por %p108, %p109
      %p111 = scmp.ne.s32.totalorder %s102, %s103
      %p112 = scmp.eq.s32.totalorder %s22, 0
      %p113 = por %p111, %p112
      %p114 = scmp.ne.s32.totalorder %s102, %s103
      %p115 = scmp.eq.s32.totalorder %s23, 1
      %p116 = por %p114, %p115
      %p118 = scmp.ne.s32.totalorder %s103, %s117
      %p119 = scmp.eq.s32.totalorder %s23, 0
      %p120 = por %p118, %p119
      %s122 = sadd.s32 %s121, 1
      %p125 = scmp.eq.s32.totalorder %s17, 1
      %p126 = scmp.ne.s32.totalorder %s121, %s123
      %p127 = scmp.eq.s32.totalorder %s17, 0
      %p128 = por %p126, %p127
      %p129 = scmp.ne.s32.totalorder %s121, %s123
      %p130 = scmp.eq.s32.totalorder %s22, 1
      %p131 = por %p129, %p130
      %p132 = scmp.ne.s32.totalorder %s123, %s124
      %p133 = scmp.eq.s32.totalorder %s22, 0
      %p134 = por %p132, %p133
      %p135 = scmp.ne.s32.totalorder %s123, %s124
      %p136 = scmp.eq.s32.totalorder %s23, 1
      %p137 = por %p135, %p136
      %p139 = scmp.ne.s32.totalorder %s124, %s138
      %p140 = scmp.eq.s32.totalorder %s23, 0
      %p141 = por %p139, %p140
      %s143 = sadd.s32 %s142, 1
      %p146 = scmp.eq.s32.totalorder %s17, 1
      %p147 = scmp.ne.s32.totalorder %s142, %s144
      %p148 = scmp.eq.s32.totalorder %s17, 0
      %p149 = por %p147, %p148
      %p150 = scmp.ne.s32.totalorder %s142, %s144
      %p151 = scmp.eq.s32.totalorder %s22, 1
      %p152 = por %p150, %p151
      %p153 = scmp.ne.s32.totalorder %s144, %s145
      %p154 = scmp.eq.s32.totalorder %s22, 0
      %p155 = por %p153, %p154
      %p156 = scmp.ne.s32.totalorder %s144, %s145
      %p157 = scmp.eq.s32.totalorder %s23, 1
      %p158 = por %p156, %p157
      %p160 = scmp.ne.s32.totalorder %s145, %s159
      %p161 = scmp.eq.s32.totalorder %s23, 0
      %p162 = por %p160, %p161
      %s164 = sadd.s32 %s163, 1
      %p167 = scmp.eq.s32.totalorder %s17, 1
      %p168 = scmp.ne.s32.totalorder %s163, %s165
      %p169 = scmp.eq.s32.totalorder %s17, 0
      %p170 = por %p168, %p169
      %p171 = scmp.ne.s32.totalorder %s163, %s165
      %p172 = scmp.eq.s32.totalorder %s22, 1
      %p173 = por %p171, %p172
      %p174 = scmp.ne.s32.totalorder %s165, %s166
      %p175 = scmp.eq.s32.totalorder %s22, 0
      %p176 = por %p174, %p175
      %p177 = scmp.ne.s32.totalorder %s165, %s166
      %p178 = scmp.eq.s32.totalorder %s23, 1
      %p179 = por %p177, %p178
      %p181 = scmp.ne.s32.totalorder %s166, %s180
      %p182 = scmp.eq.s32.totalorder %s23, 0
      %p183 = por %p181, %p182
      %s185 = sadd.s32 %s184, 1
      %p188 = scmp.eq.s32.totalorder %s17, 1
      %p189 = scmp.ne.s32.totalorder %s184, %s186
      %p190 = scmp.eq.s32.totalorder %s17, 0
      %p191 = por %p189, %p190
      %p192 = scmp.ne.s32.totalorder %s184, %s186
      %p193 = scmp.eq.s32.totalorder %s22, 1
      %p194 = por %p192, %p193
      %p195 = scmp.ne.s32.totalorder %s186, %s187
      %p196 = scmp.eq.s32.totalorder %s22, 0
      %p197 = por %p195, %p196
      %p198 = scmp.ne.s32.totalorder %s186, %s187
      %p199 = scmp.eq.s32.totalorder %s23, 1
      %p200 = por %p198, %p199
      %p202 = scmp.ne.s32.totalorder %s187, %s201
      %p203 = scmp.eq.s32.totalorder %s23, 0
      %p204 = por %p202, %p203
      %s205 = ssub.s32 %s24, %s43
      %s206 = ssub.s32 %s25, %s39
      %s207 = sor.u32 %s205, %s206
      %s208 = ssub.s32 %s26, %s35
      %s209 = sor.u32 %s207, %s208
      %p210 = scmp.eq.s32.totalorder %s209, 0
      %s212 = sadd.s32 %s211, 1
      %s213 = scalar_select %p210, %s211, %s212
      %p216 = pneg %p210
      %p217 = scmp.eq.s32.totalorder %s17, 1
      %p218 = por %p216, %p217
      %p219 = scmp.ne.s32.totalorder %s211, %s214
      %p220 = scmp.eq.s32.totalorder %s17, 0
      %p221 = por %p219, %p220
      %p222 = scmp.ne.s32.totalorder %s211, %s214
      %p223 = scmp.eq.s32.totalorder %s22, 1
      %p224 = por %p222, %p223
      %p225 = scmp.ne.s32.totalorder %s214, %s215
      %p226 = scmp.eq.s32.totalorder %s22, 0
      %p227 = por %p225, %p226
      %p228 = scmp.ne.s32.totalorder %s214, %s215
      %p229 = scmp.eq.s32.totalorder %s23, 1
      %p230 = por %p228, %p229
      %p232 = scmp.ne.s32.totalorder %s215, %s231
      %p233 = scmp.eq.s32.totalorder %s23, 0
      %p234 = por %p232, %p233
      %p235 = scmp.le.s32.totalorder 1, %s17
      %p236 = scmp.lt.s32.totalorder %s17, 3
      %p237 = pnand %p235, %p236
      %p238 = pneg %p237
      // Predicated region
      $region9: #{tpu_custom_call.1} parent=5 // pred_check
        _
      $region10: #{tpu_custom_call.1} parent=5 // pred_check_branch
        %240 = sbr.rel (%p237) target = $region12
      $region11: #{tpu_custom_call.1} parent=5 // pred_region
        %s241 = ssub.s32 %s17, 1
        // Predicated region
        $region13: #{tpu_custom_call.1} parent=11 // pred_check
          %p242 = pneg %p113
        $region14: #{tpu_custom_call.1} parent=11 // pred_check_branch
          %244 = sbr.rel (%p242) target = $region16
        $region15: #{tpu_custom_call.1} parent=11 // pred_region
          _
        $region16: #{tpu_custom_call.1} parent=11 // pred_fallthru
          _
        // Predicated region
        $region17: #{tpu_custom_call.1} parent=11 // pred_check
          %p245 = pneg %p134
        $region18: #{tpu_custom_call.1} parent=11 // pred_check_branch
          %247 = sbr.rel (%p245) target = $region20
        $region19: #{tpu_custom_call.1} parent=11 // pred_region
          _
        $region20: #{tpu_custom_call.1} parent=11 // pred_fallthru
          _
        // Predicated region
        $region21: #{tpu_custom_call.1} parent=11 // pred_check
          %p248 = pneg %p155
        $region22: #{tpu_custom_call.1} parent=11 // pred_check_branch
          %250 = sbr.rel (%p248) target = $region24
        $region23: #{tpu_custom_call.1} parent=11 // pred_region
          _
        $region24: #{tpu_custom_call.1} parent=11 // pred_fallthru
          _
        // Predicated region
        $region25: #{tpu_custom_call.1} parent=11 // pred_check
          %p251 = pneg %p176
        $region26: #{tpu_custom_call.1} parent=11 // pred_check_branch
          %253 = sbr.rel (%p251) target = $region28
        $region27: #{tpu_custom_call.1} parent=11 // pred_region
          _
        $region28: #{tpu_custom_call.1} parent=11 // pred_fallthru
          _
        // Predicated region
        $region29: #{tpu_custom_call.1} parent=11 // pred_check
          %p254 = pneg %p197
        $region30: #{tpu_custom_call.1} parent=11 // pred_check_branch
          %256 = sbr.rel (%p254) target = $region32
        $region31: #{tpu_custom_call.1} parent=11 // pred_region
          _
        $region32: #{tpu_custom_call.1} parent=11 // pred_fallthru
          _
      $region12: #{tpu_custom_call.1} parent=5 // pred_fallthru
        _
      %p257 = scmp.lt.s32.totalorder %s17, 2
      // Predicated region
      $region33: #{tpu_custom_call.1} parent=5 // pred_check
        %p258 = pneg %p257
      $region34: #{tpu_custom_call.1} parent=5 // pred_check_branch
        %260 = sbr.rel (%p258) target = $region36
      $region35: #{tpu_custom_call.1} parent=5 // pred_region
        // Predicated region
        $region37: #{tpu_custom_call.1} parent=35 // pred_check
          %p261 = pneg %p58
        $region38: #{tpu_custom_call.1} parent=35 // pred_check_branch
          %263 = sbr.rel (%p261) target = $region40
        $region39: #{tpu_custom_call.1} parent=35 // pred_region
          %p264 = scmp.lt.s32.totalorder %s24, 1
          %s265 = scalar_select %p264, %s24, 1
          %p266 = scmp.lt.s32.totalorder %s25, 0
          %s267 = scalar_select %p266, %s25, 0
          %s268 = sadd.s32 %s267, %s265
          %s269 = smul.addr %s268, 8
          %s270 = scalar_lea.vmem %s0, %s269
        $region40: #{tpu_custom_call.1} parent=35 // pred_fallthru
          _
        // Predicated region
        $region41: #{tpu_custom_call.1} parent=35 // pred_check
          %p271 = pneg %p86
        $region42: #{tpu_custom_call.1} parent=35 // pred_check_branch
          %273 = sbr.rel (%p271) target = $region44
        $region43: #{tpu_custom_call.1} parent=35 // pred_region
          %s274 = smul.u32 64, %s26
          %p275 = scmp.lt.s32.totalorder %s24, 1
          %s276 = scalar_select %p275, %s24, 1
          %p277 = scmp.lt.s32.totalorder %s274, 63
          %s278 = scalar_select %p277, %s274, 63
          %s279 = smul.addr %s276, 64
          %s280 = sadd.s32 %s278, %s279
          %s281 = smul.addr %s280, 8
          %s282 = scalar_lea.vmem %s1, %s281
          %s283 = smul.u32 64, %s26
        $region44: #{tpu_custom_call.1} parent=35 // pred_fallthru
          _
      $region36: #{tpu_custom_call.1} parent=5 // pred_fallthru
        _
      %p284 = scmp.le.s32.totalorder 1, %s17
      %p285 = scmp.lt.s32.totalorder %s17, 3
      %p286 = pnand %p284, %p285
      %p287 = pneg %p286
      // Predicated region
      $region45: #{tpu_custom_call.1} parent=5 // pred_check
        _
      $region46: #{tpu_custom_call.1} parent=5 // pred_check_branch
        %289 = sbr.rel (%p286) target = $region48
      $region47: #{tpu_custom_call.1} parent=5 // pred_region
        %s290 = ssub.s32 %s17, 1
        %p291 = scmp.lt.s32.totalorder %s27, 1
        %s292 = scalar_select %p291, %s27, 1
        %p293 = scmp.lt.s32.totalorder %s28, 0
        %s294 = scalar_select %p293, %s28, 0
        %s295 = sadd.s32 %s294, %s292
        %s296 = smul.addr %s295, 8
        %s297 = scalar_lea.vmem %s0, %s296
        %p298 = pneg %p64
        %p299 = pneg %p61
        %s300 = smul.u32 64, %s29
        %p301 = scmp.lt.s32.totalorder %s27, 1
        %s302 = scalar_select %p301, %s27, 1
        %p303 = scmp.lt.s32.totalorder %s300, 63
        %s304 = scalar_select %p303, %s300, 63
        %s305 = smul.addr %s302, 64
        %s306 = sadd.s32 %s304, %s305
        %s307 = smul.addr %s306, 8
        %s308 = scalar_lea.vmem %s1, %s307
        %p309 = pneg %p92
        %p310 = pneg %p89
        %p311 = pneg %p113
        %p312 = pneg %p110
        %p313 = pneg %p134
        %p314 = pneg %p131
        %p315 = pneg %p155
        %p316 = pneg %p152
        %p317 = pneg %p176
        %p318 = pneg %p173
        %p319 = pneg %p197
        %p320 = pneg %p194
        %p321 = pneg %p227
        %p322 = pneg %p224
        %s323 = sand.u32 %s214, 1
        %s324 = scalar_lea.sflag [#allocation5], %s323
        %s325 = sand.u32 %s214, 1
        %s326 = smul.addr %s325, 32
        %s327 = scalar_lea.vmem [#allocation4], %s326
        %p328 = scmp.lt.s32.totalorder %s27, 1
        %s329 = scalar_select %p328, %s27, 1
        %p330 = scmp.lt.s32.totalorder %s28, 0
        %s331 = scalar_select %p330, %s28, 0
        %s332 = sadd.s32 %s331, %s329
        %s333 = smul.addr %s332, 8
        %s334 = scalar_lea.vmem %s0, %s333
        %s335 = smul.u32 64, %s29
        %p336 = scmp.lt.s32.totalorder %s27, 1
        %s337 = scalar_select %p336, %s27, 1
        %p338 = scmp.lt.s32.totalorder %s335, 63
        %s339 = scalar_select %p338, %s335, 63
        %s340 = smul.addr %s337, 64
        %s341 = sadd.s32 %s339, %s340
        %s342 = smul.addr %s341, 8
        %s343 = scalar_lea.vmem %s1, %s342
        %s344 = smul.u32 64, %s29
        %s345 = smul.u32 4, %s29
        %p346 = scmp.eq.s32.totalorder %s29, 0
        // Predicated region
        $region49: #{tpu_custom_call.1} parent=47 // pred_check
          %p347 = pneg %p346
        $region50: #{tpu_custom_call.1} parent=47 // pred_check_branch
          %349 = sbr.rel (%p347) target = $region52
        $region51: #{tpu_custom_call.1} parent=47 // pred_region
          %v350 = vld [vmem:[%s334] sm:$0xff]
          %v351 = vld [vmem:[%s2] sm:$0xff]
          %v352 = vld [vmem:[%s2 + $0x8] sm:$0xff]
          %v353 = vld [vmem:[%s2 + $0x10] sm:$0xff]
          %v354 = vld [vmem:[%s2 + $0x18] sm:$0xff]
          %v355 = vld [vmem:[%s4] sm:$0x1]
          %v357 = vlaneseq
          %v358 = vshrl.u32 %v357, 7
          %v359 = vsub.s32 0, %v358
          %v360 = vrot.slane %v355, %v359
          %vm362 = vcmask 261120
          %v364 = vsel %vm362, %v350, 0
          %v367 = vsel %vm362, %v351, 0
          %v370 = vsel %vm362, %v352, 0
          %v373 = vsel %vm362, %v353, 0
          %v376 = vsel %vm362, %v354, 0
          %378 = vmatprep.subr.mxu0 0.0
          %379 = vmatpush1.xpose.msra.mxu0 %v367
          %380 = vmatprep.subr.mxu0 0.0
          %381 = vmatpush1.xpose.msra.mxu0 %v370
          %382 = vmatprep.subr.mxu0 0.0
          %383 = vmatpush1.xpose.msra.mxu0 %v373
          %384 = vmatprep.subr.mxu0 0.0
          %385 = vmatpush1.xpose.msra.mxu0 %v376
          %386 = vmatprep.subr.mxu0 0.0
          %387 = vmatpush1.xpose.msra.mxu0 0.0
          %388 = vmatprep.subr.mxu0 0.0
          %389 = vmatpush1.xpose.msra.mxu0 0.0
          %390 = vmatprep.subr.mxu0 0.0
          %391 = vmatpush1.xpose.msra.mxu0 0.0
          %392 = vmatprep.subr.mxu0 0.0
          %393 = vmatpush1.xpose.msra.mxu0 0.0
          %394 = vmatprep.subr.mxu0 0.0
          %395 = vmatpush1.xpose.msra.mxu0 0.0
          %396 = vmatprep.subr.mxu0 0.0
          %397 = vmatpush1.xpose.msra.mxu0 0.0
          %398 = vmatprep.subr.mxu0 0.0
          %399 = vmatpush1.xpose.msra.mxu0 0.0
          %400 = vmatprep.subr.mxu0 0.0
          %401 = vmatpush1.xpose.msra.mxu0 0.0
          %402 = vmatprep.subr.mxu0 0.0
          %403 = vmatpush1.xpose.msra.mxu0 0.0
          %404 = vmatprep.subr.mxu0 0.0
          %405 = vmatpush1.xpose.msra.mxu0 0.0
          %406 = vmatprep.subr.mxu0 0.0
          %407 = vmatpush1.xpose.msra.mxu0 0.0
          %408 = vmatprep.subr.mxu0 0.0
          %409 = vmatpush1.xpose.msra.mxu0 0.0
          %410 = vmatprep.subr.mxu0 0.0
          %411 = vmatpush1.xpose.msra.mxu0 0.0
          %412 = vmatprep.subr.mxu0 0.0
          %413 = vmatpush1.xpose.msra.mxu0 0.0
          %414 = vmatprep.subr.mxu0 0.0
          %415 = vmatpush1.xpose.msra.mxu0 0.0
          %416 = vmatprep.subr.mxu0 0.0
          %417 = vmatpush1.xpose.msra.mxu0 0.0
          %418 = vmatprep.subr.mxu0 0.0
          %419 = vmatpush1.xpose.msra.mxu0 0.0
          %420 = vmatprep.subr.mxu0 0.0
          %421 = vmatpush1.xpose.msra.mxu0 0.0
          %422 = vmatprep.subr.mxu0 0.0
          %423 = vmatpush1.xpose.msra.mxu0 0.0
          %424 = vmatprep.subr.mxu0 0.0
          %425 = vmatpush1.xpose.msra.mxu0 0.0
          %426 = vmatprep.subr.mxu0 0.0
          %427 = vmatpush1.xpose.msra.mxu0 0.0
          %428 = vmatprep.subr.mxu0 0.0
          %429 = vmatpush1.xpose.msra.mxu0 0.0
          %430 = vmatprep.subr.mxu0 0.0
          %431 = vmatpush1.xpose.msra.mxu0 0.0
          %432 = vmatprep.subr.mxu0 0.0
          %433 = vmatpush1.xpose.msra.mxu0 0.0
          %434 = vmatprep.subr.mxu0 0.0
          %435 = vmatpush1.xpose.msra.mxu0 0.0
          %436 = vmatprep.subr.mxu0 0.0
          %437 = vmatpush1.xpose.msra.mxu0 0.0
          %438 = vmatprep.subr.mxu0 0.0
          %439 = vmatpush1.xpose.msra.mxu0 0.0
          %440 = vmatprep.subr.mxu0 0.0
          %441 = vmatpush1.xpose.msra.mxu0 0.0
          %442 = vmatprep.mubr.f32.mxu0 0.0
          %443 = vmatmul.mubr.f32.gmra.mrb[0].mxu0 %v364
          %v444 = vpop.f32.mrb[0].mxu0
          %v445 = vadd.f32 %v360, %v444
          %v446 = vpop.f32.mrb[0].mxu0
          %447 = vdwg.mxu0
          %448 = vst.msk [vmem:[#allocation2] sm:$0xff] %vm362, %v445
        $region52: #{tpu_custom_call.1} parent=47 // pred_fallthru
          _
        %v449 = vld [vmem:[%s3] sm:$0xff]
        %v450 = vld [vmem:[%s3 + $0x8] sm:$0xff]
        %v451 = vld [vmem:[%s3 + $0x10] sm:$0xff]
        %v452 = vld [vmem:[%s3 + $0x18] sm:$0xff]
        %v453 = vld [vmem:[%s343] sm:$0xff]
        %v454 = vld [vmem:[%s343 + $0x8] sm:$0xff]
        %v455 = vld [vmem:[%s343 + $0x10] sm:$0xff]
        %v456 = vld [vmem:[%s343 + $0x18] sm:$0xff]
        %v457 = vld [vmem:[%s343 + $0x20] sm:$0xff]
        %v458 = vld [vmem:[%s343 + $0x28] sm:$0xff]
        %v459 = vld [vmem:[%s343 + $0x30] sm:$0xff]
        %v460 = vld [vmem:[%s343 + $0x38] sm:$0xff]
        %v461 = vld [vmem:[%s343 + $0x40] sm:$0xff]
        %v462 = vld [vmem:[%s343 + $0x48] sm:$0xff]
        %v463 = vld [vmem:[%s343 + $0x50] sm:$0xff]
        %v464 = vld [vmem:[%s343 + $0x58] sm:$0xff]
        %v465 = vld [vmem:[%s343 + $0x60] sm:$0xff]
        %v466 = vld [vmem:[%s343 + $0x68] sm:$0xff]
        %v467 = vld [vmem:[%s343 + $0x70] sm:$0xff]
        %v468 = vld [vmem:[%s343 + $0x78] sm:$0xff]
        %v469 = vld [vmem:[%s343 + $0x80] sm:$0xff]
        %v470 = vld [vmem:[%s343 + $0x88] sm:$0xff]
        %v471 = vld [vmem:[%s343 + $0x90] sm:$0xff]
        %v472 = vld [vmem:[%s343 + $0x98] sm:$0xff]
        %v473 = vld [vmem:[%s343 + $0xa0] sm:$0xff]
        %v474 = vld [vmem:[%s343 + $0xa8] sm:$0xff]
        %v475 = vld [vmem:[%s343 + $0xb0] sm:$0xff]
        %v476 = vld [vmem:[%s343 + $0xb8] sm:$0xff]
        %v477 = vld [vmem:[%s343 + $0xc0] sm:$0xff]
        %v478 = vld [vmem:[%s343 + $0xc8] sm:$0xff]
        %v479 = vld [vmem:[%s343 + $0xd0] sm:$0xff]
        %v480 = vld [vmem:[%s343 + $0xd8] sm:$0xff]
        %v481 = vld [vmem:[%s343 + $0xe0] sm:$0xff]
        %v482 = vld [vmem:[%s343 + $0xe8] sm:$0xff]
        %v483 = vld [vmem:[%s343 + $0xf0] sm:$0xff]
        %v484 = vld [vmem:[%s343 + $0xf8] sm:$0xff]
        %v485 = vld [vmem:[%s343 + $0x100] sm:$0xff]
        %v486 = vld [vmem:[%s343 + $0x108] sm:$0xff]
        %v487 = vld [vmem:[%s343 + $0x110] sm:$0xff]
        %v488 = vld [vmem:[%s343 + $0x118] sm:$0xff]
        %v489 = vld [vmem:[%s343 + $0x120] sm:$0xff]
        %v490 = vld [vmem:[%s343 + $0x128] sm:$0xff]
        %v491 = vld [vmem:[%s343 + $0x130] sm:$0xff]
        %v492 = vld [vmem:[%s343 + $0x138] sm:$0xff]
        %v493 = vld [vmem:[%s343 + $0x140] sm:$0xff]
        %v494 = vld [vmem:[%s343 + $0x148] sm:$0xff]
        %v495 = vld [vmem:[%s343 + $0x150] sm:$0xff]
        %v496 = vld [vmem:[%s343 + $0x158] sm:$0xff]
        %v497 = vld [vmem:[%s343 + $0x160] sm:$0xff]
        %v498 = vld [vmem:[%s343 + $0x168] sm:$0xff]
        %v499 = vld [vmem:[%s343 + $0x170] sm:$0xff]
        %v500 = vld [vmem:[%s343 + $0x178] sm:$0xff]
        %v501 = vld [vmem:[%s343 + $0x180] sm:$0xff]
        %v502 = vld [vmem:[%s343 + $0x188] sm:$0xff]
        %v503 = vld [vmem:[%s343 + $0x190] sm:$0xff]
        %v504 = vld [vmem:[%s343 + $0x198] sm:$0xff]
        %v505 = vld [vmem:[%s343 + $0x1a0] sm:$0xff]
        %v506 = vld [vmem:[%s343 + $0x1a8] sm:$0xff]
        %v507 = vld [vmem:[%s343 + $0x1b0] sm:$0xff]
        %v508 = vld [vmem:[%s343 + $0x1b8] sm:$0xff]
        %v509 = vld [vmem:[%s343 + $0x1c0] sm:$0xff]
        %v510 = vld [vmem:[%s343 + $0x1c8] sm:$0xff]
        %v511 = vld [vmem:[%s343 + $0x1d0] sm:$0xff]
        %v512 = vld [vmem:[%s343 + $0x1d8] sm:$0xff]
        %v513 = vld [vmem:[%s343 + $0x1e0] sm:$0xff]
        %v514 = vld [vmem:[%s343 + $0x1e8] sm:$0xff]
        %v515 = vld [vmem:[%s343 + $0x1f0] sm:$0xff]
        %v516 = vld [vmem:[%s343 + $0x1f8] sm:$0xff]
        %vm517 = vcmask 261120
        %v519 = vsel %vm517, %v449, 0
        %v522 = vsel %vm517, %v450, 0
        %v525 = vsel %vm517, %v451, 0
        %v528 = vsel %vm517, %v452, 0
        %v531 = vsel %vm517, %v453, 0
        %v534 = vsel %vm517, %v454, 0
        %v537 = vsel %vm517, %v455, 0
        %v540 = vsel %vm517, %v456, 0
        %v543 = vsel %vm517, %v457, 0
        %v546 = vsel %vm517, %v458, 0
        %v549 = vsel %vm517, %v459, 0
        %v552 = vsel %vm517, %v460, 0
        %v555 = vsel %vm517, %v461, 0
        %v558 = vsel %vm517, %v462, 0
        %v561 = vsel %vm517, %v463, 0
        %v564 = vsel %vm517, %v464, 0
        %v567 = vsel %vm517, %v465, 0
        %v570 = vsel %vm517, %v466, 0
        %v573 = vsel %vm517, %v467, 0
        %v576 = vsel %vm517, %v468, 0
        %v579 = vsel %vm517, %v469, 0
        %v582 = vsel %vm517, %v470, 0
        %v585 = vsel %vm517, %v471, 0
        %v588 = vsel %vm517, %v472, 0
        %v591 = vsel %vm517, %v473, 0
        %v594 = vsel %vm517, %v474, 0
        %v597 = vsel %vm517, %v475, 0
        %v600 = vsel %vm517, %v476, 0
        %v603 = vsel %vm517, %v477, 0
        %v606 = vsel %vm517, %v478, 0
        %v609 = vsel %vm517, %v479, 0
        %v612 = vsel %vm517, %v480, 0
        %v615 = vsel %vm517, %v481, 0
        %v618 = vsel %vm517, %v482, 0
        %v621 = vsel %vm517, %v483, 0
        %v624 = vsel %vm517, %v484, 0
        %v627 = vsel %vm517, %v485, 0
        %v630 = vsel %vm517, %v486, 0
        %v633 = vsel %vm517, %v487, 0
        %v636 = vsel %vm517, %v488, 0
        %v639 = vsel %vm517, %v489, 0
        %v642 = vsel %vm517, %v490, 0
        %v645 = vsel %vm517, %v491, 0
        %v648 = vsel %vm517, %v492, 0
        %v651 = vsel %vm517, %v493, 0
        %v654 = vsel %vm517, %v494, 0
        %v657 = vsel %vm517, %v495, 0
        %v660 = vsel %vm517, %v496, 0
        %v663 = vsel %vm517, %v497, 0
        %v666 = vsel %vm517, %v498, 0
        %v669 = vsel %vm517, %v499, 0
        %v672 = vsel %vm517, %v500, 0
        %v675 = vsel %vm517, %v501, 0
        %v678 = vsel %vm517, %v502, 0
        %v681 = vsel %vm517, %v503, 0
        %v684 = vsel %vm517, %v504, 0
        %v687 = vsel %vm517, %v505, 0
        %v690 = vsel %vm517, %v506, 0
        %v693 = vsel %vm517, %v507, 0
        %v696 = vsel %vm517, %v508, 0
        %v699 = vsel %vm517, %v509, 0
        %v702 = vsel %vm517, %v510, 0
        %v705 = vsel %vm517, %v511, 0
        %v708 = vsel %vm517, %v512, 0
        %v711 = vsel %vm517, %v513, 0
        %v714 = vsel %vm517, %v514, 0
        %v717 = vsel %vm517, %v515, 0
        %v720 = vsel %vm517, %v516, 0
        %722 = vmatprep.subr.mxu0 0.0
        %723 = vmatpush1.xpose.msra.mxu0 %v531
        %724 = vmatprep.subr.mxu0 0.0
        %725 = vmatpush1.xpose.msra.mxu0 %v534
        %726 = vmatprep.subr.mxu0 0.0
        %727 = vmatpush1.xpose.msra.mxu0 %v537
        %728 = vmatprep.subr.mxu0 0.0
        %729 = vmatpush1.xpose.msra.mxu0 %v540
        %730 = vmatprep.subr.mxu0 0.0
        %731 = vmatpush1.xpose.msra.mxu0 %v543
        %732 = vmatprep.subr.mxu0 0.0
        %733 = vmatpush1.xpose.msra.mxu0 %v546
        %734 = vmatprep.subr.mxu0 0.0
        %735 = vmatpush1.xpose.msra.mxu0 %v549
        %736 = vmatprep.subr.mxu0 0.0
        %737 = vmatpush1.xpose.msra.mxu0 %v552
        %738 = vmatprep.subr.mxu0 0.0
        %739 = vmatpush1.xpose.msra.mxu0 %v555
        %740 = vmatprep.subr.mxu0 0.0
        %741 = vmatpush1.xpose.msra.mxu0 %v558
        %742 = vmatprep.subr.mxu0 0.0
        %743 = vmatpush1.xpose.msra.mxu0 %v561
        %744 = vmatprep.subr.mxu0 0.0
        %745 = vmatpush1.xpose.msra.mxu0 %v564
        %746 = vmatprep.subr.mxu0 0.0
        %747 = vmatpush1.xpose.msra.mxu0 %v567
        %748 = vmatprep.subr.mxu0 0.0
        %749 = vmatpush1.xpose.msra.mxu0 %v570
        %750 = vmatprep.subr.mxu0 0.0
        %751 = vmatpush1.xpose.msra.mxu0 %v573
        %752 = vmatprep.subr.mxu0 0.0
        %753 = vmatpush1.xpose.msra.mxu0 %v576
        %754 = vmatprep.subr.mxu0 0.0
        %755 = vmatpush1.xpose.msra.mxu0 %v579
        %756 = vmatprep.subr.mxu0 0.0
        %757 = vmatpush1.xpose.msra.mxu0 %v582
        %758 = vmatprep.subr.mxu0 0.0
        %759 = vmatpush1.xpose.msra.mxu0 %v585
        %760 = vmatprep.subr.mxu0 0.0
        %761 = vmatpush1.xpose.msra.mxu0 %v588
        %762 = vmatprep.subr.mxu0 0.0
        %763 = vmatpush1.xpose.msra.mxu0 %v591
        %764 = vmatprep.subr.mxu0 0.0
        %765 = vmatpush1.xpose.msra.mxu0 %v594
        %766 = vmatprep.subr.mxu0 0.0
        %767 = vmatpush1.xpose.msra.mxu0 %v597
        %768 = vmatprep.subr.mxu0 0.0
        %769 = vmatpush1.xpose.msra.mxu0 %v600
        %770 = vmatprep.subr.mxu0 0.0
        %771 = vmatpush1.xpose.msra.mxu0 %v603
        %772 = vmatprep.subr.mxu0 0.0
        %773 = vmatpush1.xpose.msra.mxu0 %v606
        %774 = vmatprep.subr.mxu0 0.0
        %775 = vmatpush1.xpose.msra.mxu0 %v609
        %776 = vmatprep.subr.mxu0 0.0
        %777 = vmatpush1.xpose.msra.mxu0 %v612
        %778 = vmatprep.subr.mxu0 0.0
        %779 = vmatpush1.xpose.msra.mxu0 %v615
        %780 = vmatprep.subr.mxu0 0.0
        %781 = vmatpush1.xpose.msra.mxu0 %v618
        %782 = vmatprep.subr.mxu0 0.0
        %783 = vmatpush1.xpose.msra.mxu0 %v621
        %784 = vmatprep.subr.mxu0 0.0
        %785 = vmatpush1.xpose.msra.mxu0 %v624
        %786 = vmatprep.mubr.f32.mxu0 0.0
        %787 = vmatmul.mubr.f32.gmra.mrb[0].mxu0 %v519
        %v788 = vpop.f32.mrb[0].mxu0
        %v789 = vadd.f32 0.0, %v788
        %v790 = vpop.f32.mrb[0].mxu0
        %v791 = vadd.f32 0.0, %v790
        %792 = vmatprep.mubr.f32.mxu0 0.0
        %793 = vmatmul.mubr.f32.gmra.mrb[0].mxu0 %v522
        %v794 = vpop.f32.mrb[0].mxu0
        %v795 = vadd.f32 0.0, %v794
        %v796 = vpop.f32.mrb[0].mxu0
        %v797 = vadd.f32 0.0, %v796
        %798 = vmatprep.mubr.f32.mxu0 0.0
        %799 = vmatmul.mubr.f32.gmra.mrb[0].mxu0 %v525
        %v800 = vpop.f32.mrb[0].mxu0
        %v801 = vadd.f32 0.0, %v800
        %v802 = vpop.f32.mrb[0].mxu0
        %v803 = vadd.f32 0.0, %v802
        %804 = vmatprep.mubr.f32.mxu0 0.0
        %805 = vmatmul.mubr.f32.gmra.mrb[0].mxu0 %v528
        %v806 = vpop.f32.mrb[0].mxu0
        %v807 = vadd.f32 0.0, %v806
        %v808 = vpop.f32.mrb[0].mxu0
        %v809 = vadd.f32 0.0, %v808
        %810 = vdwg.mxu0
        %811 = vmatprep.subr.mxu0 0.0
        %812 = vmatpush1.xpose.msra.mxu0 %v627
        %813 = vmatprep.subr.mxu0 0.0
        %814 = vmatpush1.xpose.msra.mxu0 %v630
        %815 = vmatprep.subr.mxu0 0.0
        %816 = vmatpush1.xpose.msra.mxu0 %v633
        %817 = vmatprep.subr.mxu0 0.0
        %818 = vmatpush1.xpose.msra.mxu0 %v636
        %819 = vmatprep.subr.mxu0 0.0
        %820 = vmatpush1.xpose.msra.mxu0 %v639
        %821 = vmatprep.subr.mxu0 0.0
        %822 = vmatpush1.xpose.msra.mxu0 %v642
        %823 = vmatprep.subr.mxu0 0.0
        %824 = vmatpush1.xpose.msra.mxu0 %v645
        %825 = vmatprep.subr.mxu0 0.0
        %826 = vmatpush1.xpose.msra.mxu0 %v648
        %827 = vmatprep.subr.mxu0 0.0
        %828 = vmatpush1.xpose.msra.mxu0 %v651
        %829 = vmatprep.subr.mxu0 0.0
        %830 = vmatpush1.xpose.msra.mxu0 %v654
        %831 = vmatprep.subr.mxu0 0.0
        %832 = vmatpush1.xpose.msra.mxu0 %v657
        %833 = vmatprep.subr.mxu0 0.0
        %834 = vmatpush1.xpose.msra.mxu0 %v660
        %835 = vmatprep.subr.mxu0 0.0
        %836 = vmatpush1.xpose.msra.mxu0 %v663
        %837 = vmatprep.subr.mxu0 0.0
        %838 = vmatpush1.xpose.msra.mxu0 %v666
        %839 = vmatprep.subr.mxu0 0.0
        %840 = vmatpush1.xpose.msra.mxu0 %v669
        %841 = vmatprep.subr.mxu0 0.0
        %842 = vmatpush1.xpose.msra.mxu0 %v672
        %843 = vmatprep.subr.mxu0 0.0
        %844 = vmatpush1.xpose.msra.mxu0 %v675
        %845 = vmatprep.subr.mxu0 0.0
        %846 = vmatpush1.xpose.msra.mxu0 %v678
        %847 = vmatprep.subr.mxu0 0.0
        %848 = vmatpush1.xpose.msra.mxu0 %v681
        %849 = vmatprep.subr.mxu0 0.0
        %850 = vmatpush1.xpose.msra.mxu0 %v684
        %851 = vmatprep.subr.mxu0 0.0
        %852 = vmatpush1.xpose.msra.mxu0 %v687
        %853 = vmatprep.subr.mxu0 0.0
        %854 = vmatpush1.xpose.msra.mxu0 %v690
        %855 = vmatprep.subr.mxu0 0.0
        %856 = vmatpush1.xpose.msra.mxu0 %v693
        %857 = vmatprep.subr.mxu0 0.0
        %858 = vmatpush1.xpose.msra.mxu0 %v696
        %859 = vmatprep.subr.mxu0 0.0
        %860 = vmatpush1.xpose.msra.mxu0 %v699
        %861 = vmatprep.subr.mxu0 0.0
        %862 = vmatpush1.xpose.msra.mxu0 %v702
        %863 = vmatprep.subr.mxu0 0.0
        %864 = vmatpush1.xpose.msra.mxu0 %v705
        %865 = vmatprep.subr.mxu0 0.0
        %866 = vmatpush1.xpose.msra.mxu0 %v708
        %867 = vmatprep.subr.mxu0 0.0
        %868 = vmatpush1.xpose.msra.mxu0 %v711
        %869 = vmatprep.subr.mxu0 0.0
        %870 = vmatpush1.xpose.msra.mxu0 %v714
        %871 = vmatprep.subr.mxu0 0.0
        %872 = vmatpush1.xpose.msra.mxu0 %v717
        %873 = vmatprep.subr.mxu0 0.0
        %874 = vmatpush1.xpose.msra.mxu0 %v720
        %875 = vmatprep.mubr.f32.mxu0 0.0
        %876 = vmatmul.mubr.f32.gmra.mrb[0].mxu0 %v519
        %v877 = vpop.f32.mrb[0].mxu0
        %v878 = vadd.f32 0.0, %v877
        %v879 = vpop.f32.mrb[0].mxu0
        %v880 = vadd.f32 0.0, %v879
        %881 = vmatprep.mubr.f32.mxu0 0.0
        %882 = vmatmul.mubr.f32.gmra.mrb[0].mxu0 %v522
        %v883 = vpop.f32.mrb[0].mxu0
        %v884 = vadd.f32 0.0, %v883
        %v885 = vpop.f32.mrb[0].mxu0
        %v886 = vadd.f32 0.0, %v885
        %887 = vmatprep.mubr.f32.mxu0 0.0
        %888 = vmatmul.mubr.f32.gmra.mrb[0].mxu0 %v525
        %v889 = vpop.f32.mrb[0].mxu0
        %v890 = vadd.f32 0.0, %v889
        %v891 = vpop.f32.mrb[0].mxu0
        %v892 = vadd.f32 0.0, %v891
        %893 = vmatprep.mubr.f32.mxu0 0.0
        %894 = vmatmul.mubr.f32.gmra.mrb[0].mxu0 %v528
        %v895 = vpop.f32.mrb[0].mxu0
        %v896 = vadd.f32 0.0, %v895
        %v897 = vpop.f32.mrb[0].mxu0
        %v898 = vadd.f32 0.0, %v897
        %899 = vdwg.mxu0
        %v900 = vld [vmem:[#allocation2] sm:$0xff]
        %v901 = vld [vmem:[%s5] sm:$0x1]
        %v902 = vlaneseq
        %v903 = vshrl.u32 %v902, 7
        %v904 = vsub.s32 0, %v903
        %v905 = vrot.slane %v900, %v904
        %907 = vbcast.lane.b32.xlu0 %v905, 256
        %v908 = vpop.permute.xlu0 %907
        %v909 = vlaneseq
        %v910 = vshrl.u32 %v909, 7
        %v911 = vsub.s32 1, %v910
        %v912 = vrot.slane %v900, %v911
        %914 = vbcast.lane.b32.xlu0 %v912, 256
        %v915 = vpop.permute.xlu0 %914
        %v916 = vlaneseq
        %v917 = vshrl.u32 %v916, 7
        %v918 = vsub.s32 2, %v917
        %v919 = vrot.slane %v900, %v918
        %921 = vbcast.lane.b32.xlu0 %v919, 256
        %v922 = vpop.permute.xlu0 %921
        %v923 = vlaneseq
        %v924 = vshrl.u32 %v923, 7
        %v925 = vsub.s32 3, %v924
        %v926 = vrot.slane %v900, %v925
        %928 = vbcast.lane.b32.xlu0 %v926, 256
        %v929 = vpop.permute.xlu0 %928
        %v930 = vlaneseq
        %v931 = vshrl.u32 %v930, 7
        %v932 = vsub.s32 4, %v931
        %v933 = vrot.slane %v900, %v932
        %935 = vbcast.lane.b32.xlu0 %v933, 256
        %v936 = vpop.permute.xlu0 %935
        %v937 = vlaneseq
        %v938 = vshrl.u32 %v937, 7
        %v939 = vsub.s32 5, %v938
        %v940 = vrot.slane %v900, %v939
        %942 = vbcast.lane.b32.xlu0 %v940, 256
        %v943 = vpop.permute.xlu0 %942
        %v944 = vlaneseq
        %v945 = vshrl.u32 %v944, 7
        %v946 = vsub.s32 6, %v945
        %v947 = vrot.slane %v900, %v946
        %949 = vbcast.lane.b32.xlu0 %v947, 256
        %v950 = vpop.permute.xlu0 %949
        %v951 = vlaneseq
        %v952 = vshrl.u32 %v951, 7
        %v953 = vsub.s32 7, %v952
        %v954 = vrot.slane %v900, %v953
        %956 = vbcast.lane.b32.xlu0 %v954, 256
        %v957 = vpop.permute.xlu0 %956
        %v958 = vadd.f32 %v908, %v789
        %v959 = vadd.f32 %v908, %v791
        %v960 = vadd.f32 %v908, %v878
        %v961 = vadd.f32 %v908, %v880
        %v962 = vadd.f32 %v915, %v789
        %v963 = vadd.f32 %v915, %v791
        %v964 = vadd.f32 %v915, %v878
        %v965 = vadd.f32 %v915, %v880
        %v966 = vadd.f32 %v922, %v789
        %v967 = vadd.f32 %v922, %v791
        %v968 = vadd.f32 %v922, %v878
        %v969 = vadd.f32 %v922, %v880
        %v970 = vadd.f32 %v929, %v789
        %v971 = vadd.f32 %v929, %v791
        %v972 = vadd.f32 %v929, %v878
        %v973 = vadd.f32 %v929, %v880
        %v974 = vadd.f32 %v936, %v789
        %v975 = vadd.f32 %v936, %v791
        %v976 = vadd.f32 %v936, %v878
        %v977 = vadd.f32 %v936, %v880
        %v978 = vadd.f32 %v943, %v789
        %v979 = vadd.f32 %v943, %v791
        %v980 = vadd.f32 %v943, %v878
        %v981 = vadd.f32 %v943, %v880
        %v982 = vadd.f32 %v950, %v789
        %v983 = vadd.f32 %v950, %v791
        %v984 = vadd.f32 %v950, %v878
        %v985 = vadd.f32 %v950, %v880
        %v986 = vadd.f32 %v957, %v789
        %v987 = vadd.f32 %v957, %v791
        %v988 = vadd.f32 %v957, %v878
        %v989 = vadd.f32 %v957, %v880
        %v990 = vmax.f32 %v958, 0.0
        %v991 = vmax.f32 %v959, 0.0
        %v992 = vmax.f32 %v960, 0.0
        %v993 = vmax.f32 %v961, 0.0
        %v994 = vmax.f32 %v962, 0.0
        %v995 = vmax.f32 %v963, 0.0
        %v996 = vmax.f32 %v964, 0.0
        %v997 = vmax.f32 %v965, 0.0
        %v998 = vmax.f32 %v966, 0.0
        %v999 = vmax.f32 %v967, 0.0
        %v1000 = vmax.f32 %v968, 0.0
        %v1001 = vmax.f32 %v969, 0.0
        %v1002 = vmax.f32 %v970, 0.0
        %v1003 = vmax.f32 %v971, 0.0
        %v1004 = vmax.f32 %v972, 0.0
        %v1005 = vmax.f32 %v973, 0.0
        %v1006 = vmax.f32 %v974, 0.0
        %v1007 = vmax.f32 %v975, 0.0
        %v1008 = vmax.f32 %v976, 0.0
        %v1009 = vmax.f32 %v977, 0.0
        %v1010 = vmax.f32 %v978, 0.0
        %v1011 = vmax.f32 %v979, 0.0
        %v1012 = vmax.f32 %v980, 0.0
        %v1013 = vmax.f32 %v981, 0.0
        %v1014 = vmax.f32 %v982, 0.0
        %v1015 = vmax.f32 %v983, 0.0
        %v1016 = vmax.f32 %v984, 0.0
        %v1017 = vmax.f32 %v985, 0.0
        %v1018 = vmax.f32 %v986, 0.0
        %v1019 = vmax.f32 %v987, 0.0
        %v1020 = vmax.f32 %v988, 0.0
        %v1021 = vmax.f32 %v989, 0.0
        %v1022 = vlaneseq
        %v1023 = vshrl.u32 %v1022, 7
        %v1024 = vsub.s32 0, %v1023
        %v1025 = vrot.slane %v901, %v1024
        %1027 = vbcast.lane.b32.xlu0 %v1025, 256
        %v1028 = vpop.permute.xlu0 %1027
        %v1029 = vmul.f32 %v990, %v1028
        %v1030 = vmul.f32 %v991, %v1028
        %v1031 = vmul.f32 %v992, %v1028
        %v1032 = vmul.f32 %v993, %v1028
        %v1033 = vmul.f32 %v994, %v1028
        %v1034 = vmul.f32 %v995, %v1028
        %v1035 = vmul.f32 %v996, %v1028
        %v1036 = vmul.f32 %v997, %v1028
        %v1037 = vmul.f32 %v998, %v1028
        %v1038 = vmul.f32 %v999, %v1028
        %v1039 = vmul.f32 %v1000, %v1028
        %v1040 = vmul.f32 %v1001, %v1028
        %v1041 = vmul.f32 %v1002, %v1028
        %v1042 = vmul.f32 %v1003, %v1028
        %v1043 = vmul.f32 %v1004, %v1028
        %v1044 = vmul.f32 %v1005, %v1028
        %v1045 = vmul.f32 %v1006, %v1028
        %v1046 = vmul.f32 %v1007, %v1028
        %v1047 = vmul.f32 %v1008, %v1028
        %v1048 = vmul.f32 %v1009, %v1028
        %v1049 = vmul.f32 %v1010, %v1028
        %v1050 = vmul.f32 %v1011, %v1028
        %v1051 = vmul.f32 %v1012, %v1028
        %v1052 = vmul.f32 %v1013, %v1028
        %v1053 = vmul.f32 %v1014, %v1028
        %v1054 = vmul.f32 %v1015, %v1028
        %v1055 = vmul.f32 %v1016, %v1028
        %v1056 = vmul.f32 %v1017, %v1028
        %v1057 = vmul.f32 %v1018, %v1028
        %v1058 = vmul.f32 %v1019, %v1028
        %v1059 = vmul.f32 %v1020, %v1028
        %v1060 = vmul.f32 %v1021, %v1028
        %v1061 = vrot.slane %v1029, 4
        %v1062 = vadd.f32 %v1029, %v1061
        %v1063 = vrot.slane %v1062, 2
        %v1064 = vadd.f32 %v1062, %v1063
        %v1065 = vrot.slane %v1064, 1
        %v1066 = vadd.f32 %v1064, %v1065
        %v1067 = vrot.slane %v1030, 4
        %v1068 = vadd.f32 %v1030, %v1067
        %v1069 = vrot.slane %v1068, 2
        %v1070 = vadd.f32 %v1068, %v1069
        %v1071 = vrot.slane %v1070, 1
        %v1072 = vadd.f32 %v1070, %v1071
        %v1073 = vrot.slane %v1031, 4
        %v1074 = vadd.f32 %v1031, %v1073
        %v1075 = vrot.slane %v1074, 2
        %v1076 = vadd.f32 %v1074, %v1075
        %v1077 = vrot.slane %v1076, 1
        %v1078 = vadd.f32 %v1076, %v1077
        %v1079 = vrot.slane %v1032, 4
        %v1080 = vadd.f32 %v1032, %v1079
        %v1081 = vrot.slane %v1080, 2
        %v1082 = vadd.f32 %v1080, %v1081
        %v1083 = vrot.slane %v1082, 1
        %v1084 = vadd.f32 %v1082, %v1083
        %v1085 = vrot.slane %v1033, 4
        %v1086 = vadd.f32 %v1033, %v1085
        %v1087 = vrot.slane %v1086, 2
        %v1088 = vadd.f32 %v1086, %v1087
        %v1089 = vrot.slane %v1088, 1
        %v1090 = vadd.f32 %v1088, %v1089
        %v1091 = vrot.slane %v1034, 4
        %v1092 = vadd.f32 %v1034, %v1091
        %v1093 = vrot.slane %v1092, 2
        %v1094 = vadd.f32 %v1092, %v1093
        %v1095 = vrot.slane %v1094, 1
        %v1096 = vadd.f32 %v1094, %v1095
        %v1097 = vrot.slane %v1035, 4
        %v1098 = vadd.f32 %v1035, %v1097
        %v1099 = vrot.slane %v1098, 2
        %v1100 = vadd.f32 %v1098, %v1099
        %v1101 = vrot.slane %v1100, 1
        %v1102 = vadd.f32 %v1100, %v1101
        %v1103 = vrot.slane %v1036, 4
        %v1104 = vadd.f32 %v1036, %v1103
        %v1105 = vrot.slane %v1104, 2
        %v1106 = vadd.f32 %v1104, %v1105
        %v1107 = vrot.slane %v1106, 1
        %v1108 = vadd.f32 %v1106, %v1107
        %v1109 = vrot.slane %v1037, 4
        %v1110 = vadd.f32 %v1037, %v1109
        %v1111 = vrot.slane %v1110, 2
        %v1112 = vadd.f32 %v1110, %v1111
        %v1113 = vrot.slane %v1112, 1
        %v1114 = vadd.f32 %v1112, %v1113
        %v1115 = vrot.slane %v1038, 4
        %v1116 = vadd.f32 %v1038, %v1115
        %v1117 = vrot.slane %v1116, 2
        %v1118 = vadd.f32 %v1116, %v1117
        %v1119 = vrot.slane %v1118, 1
        %v1120 = vadd.f32 %v1118, %v1119
        %v1121 = vrot.slane %v1039, 4
        %v1122 = vadd.f32 %v1039, %v1121
        %v1123 = vrot.slane %v1122, 2
        %v1124 = vadd.f32 %v1122, %v1123
        %v1125 = vrot.slane %v1124, 1
        %v1126 = vadd.f32 %v1124, %v1125
        %v1127 = vrot.slane %v1040, 4
        %v1128 = vadd.f32 %v1040, %v1127
        %v1129 = vrot.slane %v1128, 2
        %v1130 = vadd.f32 %v1128, %v1129
        %v1131 = vrot.slane %v1130, 1
        %v1132 = vadd.f32 %v1130, %v1131
        %v1133 = vrot.slane %v1041, 4
        %v1134 = vadd.f32 %v1041, %v1133
        %v1135 = vrot.slane %v1134, 2
        %v1136 = vadd.f32 %v1134, %v1135
        %v1137 = vrot.slane %v1136, 1
        %v1138 = vadd.f32 %v1136, %v1137
        %v1139 = vrot.slane %v1042, 4
        %v1140 = vadd.f32 %v1042, %v1139
        %v1141 = vrot.slane %v1140, 2
        %v1142 = vadd.f32 %v1140, %v1141
        %v1143 = vrot.slane %v1142, 1
        %v1144 = vadd.f32 %v1142, %v1143
        %v1145 = vrot.slane %v1043, 4
        %v1146 = vadd.f32 %v1043, %v1145
        %v1147 = vrot.slane %v1146, 2
        %v1148 = vadd.f32 %v1146, %v1147
        %v1149 = vrot.slane %v1148, 1
        %v1150 = vadd.f32 %v1148, %v1149
        %v1151 = vrot.slane %v1044, 4
        %v1152 = vadd.f32 %v1044, %v1151
        %v1153 = vrot.slane %v1152, 2
        %v1154 = vadd.f32 %v1152, %v1153
        %v1155 = vrot.slane %v1154, 1
        %v1156 = vadd.f32 %v1154, %v1155
        %v1157 = vrot.slane %v1045, 4
        %v1158 = vadd.f32 %v1045, %v1157
        %v1159 = vrot.slane %v1158, 2
        %v1160 = vadd.f32 %v1158, %v1159
        %v1161 = vrot.slane %v1160, 1
        %v1162 = vadd.f32 %v1160, %v1161
        %v1163 = vrot.slane %v1046, 4
        %v1164 = vadd.f32 %v1046, %v1163
        %v1165 = vrot.slane %v1164, 2
        %v1166 = vadd.f32 %v1164, %v1165
        %v1167 = vrot.slane %v1166, 1
        %v1168 = vadd.f32 %v1166, %v1167
        %v1169 = vrot.slane %v1047, 4
        %v1170 = vadd.f32 %v1047, %v1169
        %v1171 = vrot.slane %v1170, 2
        %v1172 = vadd.f32 %v1170, %v1171
        %v1173 = vrot.slane %v1172, 1
        %v1174 = vadd.f32 %v1172, %v1173
        %v1175 = vrot.slane %v1048, 4
        %v1176 = vadd.f32 %v1048, %v1175
        %v1177 = vrot.slane %v1176, 2
        %v1178 = vadd.f32 %v1176, %v1177
        %v1179 = vrot.slane %v1178, 1
        %v1180 = vadd.f32 %v1178, %v1179
        %v1181 = vrot.slane %v1049, 4
        %v1182 = vadd.f32 %v1049, %v1181
        %v1183 = vrot.slane %v1182, 2
        %v1184 = vadd.f32 %v1182, %v1183
        %v1185 = vrot.slane %v1184, 1
        %v1186 = vadd.f32 %v1184, %v1185
        %v1187 = vrot.slane %v1050, 4
        %v1188 = vadd.f32 %v1050, %v1187
        %v1189 = vrot.slane %v1188, 2
        %v1190 = vadd.f32 %v1188, %v1189
        %v1191 = vrot.slane %v1190, 1
        %v1192 = vadd.f32 %v1190, %v1191
        %v1193 = vrot.slane %v1051, 4
        %v1194 = vadd.f32 %v1051, %v1193
        %v1195 = vrot.slane %v1194, 2
        %v1196 = vadd.f32 %v1194, %v1195
        %v1197 = vrot.slane %v1196, 1
        %v1198 = vadd.f32 %v1196, %v1197
        %v1199 = vrot.slane %v1052, 4
        %v1200 = vadd.f32 %v1052, %v1199
        %v1201 = vrot.slane %v1200, 2
        %v1202 = vadd.f32 %v1200, %v1201
        %v1203 = vrot.slane %v1202, 1
        %v1204 = vadd.f32 %v1202, %v1203
        %v1205 = vrot.slane %v1053, 4
        %v1206 = vadd.f32 %v1053, %v1205
        %v1207 = vrot.slane %v1206, 2
        %v1208 = vadd.f32 %v1206, %v1207
        %v1209 = vrot.slane %v1208, 1
        %v1210 = vadd.f32 %v1208, %v1209
        %v1211 = vrot.slane %v1054, 4
        %v1212 = vadd.f32 %v1054, %v1211
        %v1213 = vrot.slane %v1212, 2
        %v1214 = vadd.f32 %v1212, %v1213
        %v1215 = vrot.slane %v1214, 1
        %v1216 = vadd.f32 %v1214, %v1215
        %v1217 = vrot.slane %v1055, 4
        %v1218 = vadd.f32 %v1055, %v1217
        %v1219 = vrot.slane %v1218, 2
        %v1220 = vadd.f32 %v1218, %v1219
        %v1221 = vrot.slane %v1220, 1
        %v1222 = vadd.f32 %v1220, %v1221
        %v1223 = vrot.slane %v1056, 4
        %v1224 = vadd.f32 %v1056, %v1223
        %v1225 = vrot.slane %v1224, 2
        %v1226 = vadd.f32 %v1224, %v1225
        %v1227 = vrot.slane %v1226, 1
        %v1228 = vadd.f32 %v1226, %v1227
        %v1229 = vrot.slane %v1057, 4
        %v1230 = vadd.f32 %v1057, %v1229
        %v1231 = vrot.slane %v1230, 2
        %v1232 = vadd.f32 %v1230, %v1231
        %v1233 = vrot.slane %v1232, 1
        %v1234 = vadd.f32 %v1232, %v1233
        %v1235 = vrot.slane %v1058, 4
        %v1236 = vadd.f32 %v1058, %v1235
        %v1237 = vrot.slane %v1236, 2
        %v1238 = vadd.f32 %v1236, %v1237
        %v1239 = vrot.slane %v1238, 1
        %v1240 = vadd.f32 %v1238, %v1239
        %v1241 = vrot.slane %v1059, 4
        %v1242 = vadd.f32 %v1059, %v1241
        %v1243 = vrot.slane %v1242, 2
        %v1244 = vadd.f32 %v1242, %v1243
        %v1245 = vrot.slane %v1244, 1
        %v1246 = vadd.f32 %v1244, %v1245
        %v1247 = vrot.slane %v1060, 4
        %v1248 = vadd.f32 %v1060, %v1247
        %v1249 = vrot.slane %v1248, 2
        %v1250 = vadd.f32 %v1248, %v1249
        %v1251 = vrot.slane %v1250, 1
        %v1252 = vadd.f32 %v1250, %v1251
        %v1253 = vadd.f32 %v1066, 0.0
        %v1254 = vadd.f32 %v1072, 0.0
        %v1255 = vadd.f32 %v1078, 0.0
        %v1256 = vadd.f32 %v1084, 0.0
        %v1257 = vadd.f32 %v1090, 0.0
        %v1258 = vadd.f32 %v1096, 0.0
        %v1259 = vadd.f32 %v1102, 0.0
        %v1260 = vadd.f32 %v1108, 0.0
        %v1261 = vadd.f32 %v1114, 0.0
        %v1262 = vadd.f32 %v1120, 0.0
        %v1263 = vadd.f32 %v1126, 0.0
        %v1264 = vadd.f32 %v1132, 0.0
        %v1265 = vadd.f32 %v1138, 0.0
        %v1266 = vadd.f32 %v1144, 0.0
        %v1267 = vadd.f32 %v1150, 0.0
        %v1268 = vadd.f32 %v1156, 0.0
        %v1269 = vadd.f32 %v1162, 0.0
        %v1270 = vadd.f32 %v1168, 0.0
        %v1271 = vadd.f32 %v1174, 0.0
        %v1272 = vadd.f32 %v1180, 0.0
        %v1273 = vadd.f32 %v1186, 0.0
        %v1274 = vadd.f32 %v1192, 0.0
        %v1275 = vadd.f32 %v1198, 0.0
        %v1276 = vadd.f32 %v1204, 0.0
        %v1277 = vadd.f32 %v1210, 0.0
        %v1278 = vadd.f32 %v1216, 0.0
        %v1279 = vadd.f32 %v1222, 0.0
        %v1280 = vadd.f32 %v1228, 0.0
        %v1281 = vadd.f32 %v1234, 0.0
        %v1282 = vadd.f32 %v1240, 0.0
        %v1283 = vadd.f32 %v1246, 0.0
        %v1284 = vadd.f32 %v1252, 0.0
        %s1286 = sor.u32 256, 8
        %1287 = vbcast.lane.b32.xlu0 %v905, %s1286
        %v1288 = vpop.permute.xlu0 %1287
        %s1290 = sor.u32 256, 8
        %1291 = vbcast.lane.b32.xlu0 %v912, %s1290
        %v1292 = vpop.permute.xlu0 %1291
        %s1294 = sor.u32 256, 8
        %1295 = vbcast.lane.b32.xlu0 %v919, %s1294
        %v1296 = vpop.permute.xlu0 %1295
        %s1298 = sor.u32 256, 8
        %1299 = vbcast.lane.b32.xlu0 %v926, %s1298
        %v1300 = vpop.permute.xlu0 %1299
        %s1302 = sor.u32 256, 8
        %1303 = vbcast.lane.b32.xlu0 %v933, %s1302
        %v1304 = vpop.permute.xlu0 %1303
        %s1306 = sor.u32 256, 8
        %1307 = vbcast.lane.b32.xlu0 %v940, %s1306
        %v1308 = vpop.permute.xlu0 %1307
        %s1310 = sor.u32 256, 8
        %1311 = vbcast.lane.b32.xlu0 %v947, %s1310
        %v1312 = vpop.permute.xlu0 %1311
        %s1314 = sor.u32 256, 8
        %1315 = vbcast.lane.b32.xlu0 %v954, %s1314
        %v1316 = vpop.permute.xlu0 %1315
        %v1317 = vadd.f32 %v1288, %v795
        %v1318 = vadd.f32 %v1288, %v797
        %v1319 = vadd.f32 %v1288, %v884
        %v1320 = vadd.f32 %v1288, %v886
        %v1321 = vadd.f32 %v1292, %v795
        %v1322 = vadd.f32 %v1292, %v797
        %v1323 = vadd.f32 %v1292, %v884
        %v1324 = vadd.f32 %v1292, %v886
        %v1325 = vadd.f32 %v1296, %v795
        %v1326 = vadd.f32 %v1296, %v797
        %v1327 = vadd.f32 %v1296, %v884
        %v1328 = vadd.f32 %v1296, %v886
        %v1329 = vadd.f32 %v1300, %v795
        %v1330 = vadd.f32 %v1300, %v797
        %v1331 = vadd.f32 %v1300, %v884
        %v1332 = vadd.f32 %v1300, %v886
        %v1333 = vadd.f32 %v1304, %v795
        %v1334 = vadd.f32 %v1304, %v797
        %v1335 = vadd.f32 %v1304, %v884
        %v1336 = vadd.f32 %v1304, %v886
        %v1337 = vadd.f32 %v1308, %v795
        %v1338 = vadd.f32 %v1308, %v797
        %v1339 = vadd.f32 %v1308, %v884
        %v1340 = vadd.f32 %v1308, %v886
        %v1341 = vadd.f32 %v1312, %v795
        %v1342 = vadd.f32 %v1312, %v797
        %v1343 = vadd.f32 %v1312, %v884
        %v1344 = vadd.f32 %v1312, %v886
        %v1345 = vadd.f32 %v1316, %v795
        %v1346 = vadd.f32 %v1316, %v797
        %v1347 = vadd.f32 %v1316, %v884
        %v1348 = vadd.f32 %v1316, %v886
        %v1349 = vmax.f32 %v1317, 0.0
        %v1350 = vmax.f32 %v1318, 0.0
        %v1351 = vmax.f32 %v1319, 0.0
        %v1352 = vmax.f32 %v1320, 0.0
        %v1353 = vmax.f32 %v1321, 0.0
        %v1354 = vmax.f32 %v1322, 0.0
        %v1355 = vmax.f32 %v1323, 0.0
        %v1356 = vmax.f32 %v1324, 0.0
        %v1357 = vmax.f32 %v1325, 0.0
        %v1358 = vmax.f32 %v1326, 0.0
        %v1359 = vmax.f32 %v1327, 0.0
        %v1360 = vmax.f32 %v1328, 0.0
        %v1361 = vmax.f32 %v1329, 0.0
        %v1362 = vmax.f32 %v1330, 0.0
        %v1363 = vmax.f32 %v1331, 0.0
        %v1364 = vmax.f32 %v1332, 0.0
        %v1365 = vmax.f32 %v1333, 0.0
        %v1366 = vmax.f32 %v1334, 0.0
        %v1367 = vmax.f32 %v1335, 0.0
        %v1368 = vmax.f32 %v1336, 0.0
        %v1369 = vmax.f32 %v1337, 0.0
        %v1370 = vmax.f32 %v1338, 0.0
        %v1371 = vmax.f32 %v1339, 0.0
        %v1372 = vmax.f32 %v1340, 0.0
        %v1373 = vmax.f32 %v1341, 0.0
        %v1374 = vmax.f32 %v1342, 0.0
        %v1375 = vmax.f32 %v1343, 0.0
        %v1376 = vmax.f32 %v1344, 0.0
        %v1377 = vmax.f32 %v1345, 0.0
        %v1378 = vmax.f32 %v1346, 0.0
        %v1379 = vmax.f32 %v1347, 0.0
        %v1380 = vmax.f32 %v1348, 0.0
        %s1382 = sor.u32 256, 8
        %1383 = vbcast.lane.b32.xlu0 %v1025, %s1382
        %v1384 = vpop.permute.xlu0 %1383
        %v1385 = vmul.f32 %v1349, %v1384
        %v1386 = vmul.f32 %v1350, %v1384
        %v1387 = vmul.f32 %v1351, %v1384
        %v1388 = vmul.f32 %v1352, %v1384
        %v1389 = vmul.f32 %v1353, %v1384
        %v1390 = vmul.f32 %v1354, %v1384
        %v1391 = vmul.f32 %v1355, %v1384
        %v1392 = vmul.f32 %v1356, %v1384
        %v1393 = vmul.f32 %v1357, %v1384
        %v1394 = vmul.f32 %v1358, %v1384
        %v1395 = vmul.f32 %v1359, %v1384
        %v1396 = vmul.f32 %v1360, %v1384
        %v1397 = vmul.f32 %v1361, %v1384
        %v1398 = vmul.f32 %v1362, %v1384
        %v1399 = vmul.f32 %v1363, %v1384
        %v1400 = vmul.f32 %v1364, %v1384
        %v1401 = vmul.f32 %v1365, %v1384
        %v1402 = vmul.f32 %v1366, %v1384
        %v1403 = vmul.f32 %v1367, %v1384
        %v1404 = vmul.f32 %v1368, %v1384
        %v1405 = vmul.f32 %v1369, %v1384
        %v1406 = vmul.f32 %v1370, %v1384
        %v1407 = vmul.f32 %v1371, %v1384
        %v1408 = vmul.f32 %v1372, %v1384
        %v1409 = vmul.f32 %v1373, %v1384
        %v1410 = vmul.f32 %v1374, %v1384
        %v1411 = vmul.f32 %v1375, %v1384
        %v1412 = vmul.f32 %v1376, %v1384
        %v1413 = vmul.f32 %v1377, %v1384
        %v1414 = vmul.f32 %v1378, %v1384
        %v1415 = vmul.f32 %v1379, %v1384
        %v1416 = vmul.f32 %v1380, %v1384
        %v1417 = vrot.slane %v1385, 4
        %v1418 = vadd.f32 %v1385, %v1417
        %v1419 = vrot.slane %v1418, 2
        %v1420 = vadd.f32 %v1418, %v1419
        %v1421 = vrot.slane %v1420, 1
        %v1422 = vadd.f32 %v1420, %v1421
        %v1423 = vrot.slane %v1386, 4
        %v1424 = vadd.f32 %v1386, %v1423
        %v1425 = vrot.slane %v1424, 2
        %v1426 = vadd.f32 %v1424, %v1425
        %v1427 = vrot.slane %v1426, 1
        %v1428 = vadd.f32 %v1426, %v1427
        %v1429 = vrot.slane %v1387, 4
        %v1430 = vadd.f32 %v1387, %v1429
        %v1431 = vrot.slane %v1430, 2
        %v1432 = vadd.f32 %v1430, %v1431
        %v1433 = vrot.slane %v1432, 1
        %v1434 = vadd.f32 %v1432, %v1433
        %v1435 = vrot.slane %v1388, 4
        %v1436 = vadd.f32 %v1388, %v1435
        %v1437 = vrot.slane %v1436, 2
        %v1438 = vadd.f32 %v1436, %v1437
        %v1439 = vrot.slane %v1438, 1
        %v1440 = vadd.f32 %v1438, %v1439
        %v1441 = vrot.slane %v1389, 4
        %v1442 = vadd.f32 %v1389, %v1441
        %v1443 = vrot.slane %v1442, 2
        %v1444 = vadd.f32 %v1442, %v1443
        %v1445 = vrot.slane %v1444, 1
        %v1446 = vadd.f32 %v1444, %v1445
        %v1447 = vrot.slane %v1390, 4
        %v1448 = vadd.f32 %v1390, %v1447
        %v1449 = vrot.slane %v1448, 2
        %v1450 = vadd.f32 %v1448, %v1449
        %v1451 = vrot.slane %v1450, 1
        %v1452 = vadd.f32 %v1450, %v1451
        %v1453 = vrot.slane %v1391, 4
        %v1454 = vadd.f32 %v1391, %v1453
        %v1455 = vrot.slane %v1454, 2
        %v1456 = vadd.f32 %v1454, %v1455
        %v1457 = vrot.slane %v1456, 1
        %v1458 = vadd.f32 %v1456, %v1457
        %v1459 = vrot.slane %v1392, 4
        %v1460 = vadd.f32 %v1392, %v1459
        %v1461 = vrot.slane %v1460, 2
        %v1462 = vadd.f32 %v1460, %v1461
        %v1463 = vrot.slane %v1462, 1
        %v1464 = vadd.f32 %v1462, %v1463
        %v1465 = vrot.slane %v1393, 4
        %v1466 = vadd.f32 %v1393, %v1465
        %v1467 = vrot.slane %v1466, 2
        %v1468 = vadd.f32 %v1466, %v1467
        %v1469 = vrot.slane %v1468, 1
        %v1470 = vadd.f32 %v1468, %v1469
        %v1471 = vrot.slane %v1394, 4
        %v1472 = vadd.f32 %v1394, %v1471
        %v1473 = vrot.slane %v1472, 2
        %v1474 = vadd.f32 %v1472, %v1473
        %v1475 = vrot.slane %v1474, 1
        %v1476 = vadd.f32 %v1474, %v1475
        %v1477 = vrot.slane %v1395, 4
        %v1478 = vadd.f32 %v1395, %v1477
        %v1479 = vrot.slane %v1478, 2
        %v1480 = vadd.f32 %v1478, %v1479
        %v1481 = vrot.slane %v1480, 1
        %v1482 = vadd.f32 %v1480, %v1481
        %v1483 = vrot.slane %v1396, 4
        %v1484 = vadd.f32 %v1396, %v1483
        %v1485 = vrot.slane %v1484, 2
        %v1486 = vadd.f32 %v1484, %v1485
        %v1487 = vrot.slane %v1486, 1
        %v1488 = vadd.f32 %v1486, %v1487
        %v1489 = vrot.slane %v1397, 4
        %v1490 = vadd.f32 %v1397, %v1489
        %v1491 = vrot.slane %v1490, 2
        %v1492 = vadd.f32 %v1490, %v1491
        %v1493 = vrot.slane %v1492, 1
        %v1494 = vadd.f32 %v1492, %v1493
        %v1495 = vrot.slane %v1398, 4
        %v1496 = vadd.f32 %v1398, %v1495
        %v1497 = vrot.slane %v1496, 2
        %v1498 = vadd.f32 %v1496, %v1497
        %v1499 = vrot.slane %v1498, 1
        %v1500 = vadd.f32 %v1498, %v1499
        %v1501 = vrot.slane %v1399, 4
        %v1502 = vadd.f32 %v1399, %v1501
        %v1503 = vrot.slane %v1502, 2
        %v1504 = vadd.f32 %v1502, %v1503
        %v1505 = vrot.slane %v1504, 1
        %v1506 = vadd.f32 %v1504, %v1505
        %v1507 = vrot.slane %v1400, 4
        %v1508 = vadd.f32 %v1400, %v1507
        %v1509 = vrot.slane %v1508, 2
        %v1510 = vadd.f32 %v1508, %v1509
        %v1511 = vrot.slane %v1510, 1
        %v1512 = vadd.f32 %v1510, %v1511
        %v1513 = vrot.slane %v1401, 4
        %v1514 = vadd.f32 %v1401, %v1513
        %v1515 = vrot.slane %v1514, 2
        %v1516 = vadd.f32 %v1514, %v1515
        %v1517 = vrot.slane %v1516, 1
        %v1518 = vadd.f32 %v1516, %v1517
        %v1519 = vrot.slane %v1402, 4
        %v1520 = vadd.f32 %v1402, %v1519
        %v1521 = vrot.slane %v1520, 2
        %v1522 = vadd.f32 %v1520, %v1521
        %v1523 = vrot.slane %v1522, 1
        %v1524 = vadd.f32 %v1522, %v1523
        %v1525 = vrot.slane %v1403, 4
        %v1526 = vadd.f32 %v1403, %v1525
        %v1527 = vrot.slane %v1526, 2
        %v1528 = vadd.f32 %v1526, %v1527
        %v1529 = vrot.slane %v1528, 1
        %v1530 = vadd.f32 %v1528, %v1529
        %v1531 = vrot.slane %v1404, 4
        %v1532 = vadd.f32 %v1404, %v1531
        %v1533 = vrot.slane %v1532, 2
        %v1534 = vadd.f32 %v1532, %v1533
        %v1535 = vrot.slane %v1534, 1
        %v1536 = vadd.f32 %v1534, %v1535
        %v1537 = vrot.slane %v1405, 4
        %v1538 = vadd.f32 %v1405, %v1537
        %v1539 = vrot.slane %v1538, 2
        %v1540 = vadd.f32 %v1538, %v1539
        %v1541 = vrot.slane %v1540, 1
        %v1542 = vadd.f32 %v1540, %v1541
        %v1543 = vrot.slane %v1406, 4
        %v1544 = vadd.f32 %v1406, %v1543
        %v1545 = vrot.slane %v1544, 2
        %v1546 = vadd.f32 %v1544, %v1545
        %v1547 = vrot.slane %v1546, 1
        %v1548 = vadd.f32 %v1546, %v1547
        %v1549 = vrot.slane %v1407, 4
        %v1550 = vadd.f32 %v1407, %v1549
        %v1551 = vrot.slane %v1550, 2
        %v1552 = vadd.f32 %v1550, %v1551
        %v1553 = vrot.slane %v1552, 1
        %v1554 = vadd.f32 %v1552, %v1553
        %v1555 = vrot.slane %v1408, 4
        %v1556 = vadd.f32 %v1408, %v1555
        %v1557 = vrot.slane %v1556, 2
        %v1558 = vadd.f32 %v1556, %v1557
        %v1559 = vrot.slane %v1558, 1
        %v1560 = vadd.f32 %v1558, %v1559
        %v1561 = vrot.slane %v1409, 4
        %v1562 = vadd.f32 %v1409, %v1561
        %v1563 = vrot.slane %v1562, 2
        %v1564 = vadd.f32 %v1562, %v1563
        %v1565 = vrot.slane %v1564, 1
        %v1566 = vadd.f32 %v1564, %v1565
        %v1567 = vrot.slane %v1410, 4
        %v1568 = vadd.f32 %v1410, %v1567
        %v1569 = vrot.slane %v1568, 2
        %v1570 = vadd.f32 %v1568, %v1569
        %v1571 = vrot.slane %v1570, 1
        %v1572 = vadd.f32 %v1570, %v1571
        %v1573 = vrot.slane %v1411, 4
        %v1574 = vadd.f32 %v1411, %v1573
        %v1575 = vrot.slane %v1574, 2
        %v1576 = vadd.f32 %v1574, %v1575
        %v1577 = vrot.slane %v1576, 1
        %v1578 = vadd.f32 %v1576, %v1577
        %v1579 = vrot.slane %v1412, 4
        %v1580 = vadd.f32 %v1412, %v1579
        %v1581 = vrot.slane %v1580, 2
        %v1582 = vadd.f32 %v1580, %v1581
        %v1583 = vrot.slane %v1582, 1
        %v1584 = vadd.f32 %v1582, %v1583
        %v1585 = vrot.slane %v1413, 4
        %v1586 = vadd.f32 %v1413, %v1585
        %v1587 = vrot.slane %v1586, 2
        %v1588 = vadd.f32 %v1586, %v1587
        %v1589 = vrot.slane %v1588, 1
        %v1590 = vadd.f32 %v1588, %v1589
        %v1591 = vrot.slane %v1414, 4
        %v1592 = vadd.f32 %v1414, %v1591
        %v1593 = vrot.slane %v1592, 2
        %v1594 = vadd.f32 %v1592, %v1593
        %v1595 = vrot.slane %v1594, 1
        %v1596 = vadd.f32 %v1594, %v1595
        %v1597 = vrot.slane %v1415, 4
        %v1598 = vadd.f32 %v1415, %v1597
        %v1599 = vrot.slane %v1598, 2
        %v1600 = vadd.f32 %v1598, %v1599
        %v1601 = vrot.slane %v1600, 1
        %v1602 = vadd.f32 %v1600, %v1601
        %v1603 = vrot.slane %v1416, 4
        %v1604 = vadd.f32 %v1416, %v1603
        %v1605 = vrot.slane %v1604, 2
        %v1606 = vadd.f32 %v1604, %v1605
        %v1607 = vrot.slane %v1606, 1
        %v1608 = vadd.f32 %v1606, %v1607
        %v1609 = vadd.f32 %v1253, %v1422
        %v1610 = vadd.f32 %v1254, %v1428
        %v1611 = vadd.f32 %v1255, %v1434
        %v1612 = vadd.f32 %v1256, %v1440
        %v1613 = vadd.f32 %v1257, %v1446
        %v1614 = vadd.f32 %v1258, %v1452
        %v1615 = vadd.f32 %v1259, %v1458
        %v1616 = vadd.f32 %v1260, %v1464
        %v1617 = vadd.f32 %v1261, %v1470
        %v1618 = vadd.f32 %v1262, %v1476
        %v1619 = vadd.f32 %v1263, %v1482
        %v1620 = vadd.f32 %v1264, %v1488
        %v1621 = vadd.f32 %v1265, %v1494
        %v1622 = vadd.f32 %v1266, %v1500
        %v1623 = vadd.f32 %v1267, %v1506
        %v1624 = vadd.f32 %v1268, %v1512
        %v1625 = vadd.f32 %v1269, %v1518
        %v1626 = vadd.f32 %v1270, %v1524
        %v1627 = vadd.f32 %v1271, %v1530
        %v1628 = vadd.f32 %v1272, %v1536
        %v1629 = vadd.f32 %v1273, %v1542
        %v1630 = vadd.f32 %v1274, %v1548
        %v1631 = vadd.f32 %v1275, %v1554
        %v1632 = vadd.f32 %v1276, %v1560
        %v1633 = vadd.f32 %v1277, %v1566
        %v1634 = vadd.f32 %v1278, %v1572
        %v1635 = vadd.f32 %v1279, %v1578
        %v1636 = vadd.f32 %v1280, %v1584
        %v1637 = vadd.f32 %v1281, %v1590
        %v1638 = vadd.f32 %v1282, %v1596
        %v1639 = vadd.f32 %v1283, %v1602
        %v1640 = vadd.f32 %v1284, %v1608
        %s1642 = sor.u32 256, 16
        %1643 = vbcast.lane.b32.xlu0 %v905, %s1642
        %v1644 = vpop.permute.xlu0 %1643
        %s1646 = sor.u32 256, 16
        %1647 = vbcast.lane.b32.xlu0 %v912, %s1646
        %v1648 = vpop.permute.xlu0 %1647
        %s1650 = sor.u32 256, 16
        %1651 = vbcast.lane.b32.xlu0 %v919, %s1650
        %v1652 = vpop.permute.xlu0 %1651
        %s1654 = sor.u32 256, 16
        %1655 = vbcast.lane.b32.xlu0 %v926, %s1654
        %v1656 = vpop.permute.xlu0 %1655
        %s1658 = sor.u32 256, 16
        %1659 = vbcast.lane.b32.xlu0 %v933, %s1658
        %v1660 = vpop.permute.xlu0 %1659
        %s1662 = sor.u32 256, 16
        %1663 = vbcast.lane.b32.xlu0 %v940, %s1662
        %v1664 = vpop.permute.xlu0 %1663
        %s1666 = sor.u32 256, 16
        %1667 = vbcast.lane.b32.xlu0 %v947, %s1666
        %v1668 = vpop.permute.xlu0 %1667
        %s1670 = sor.u32 256, 16
        %1671 = vbcast.lane.b32.xlu0 %v954, %s1670
        %v1672 = vpop.permute.xlu0 %1671
        %v1673 = vadd.f32 %v1644, %v801
        %v1674 = vadd.f32 %v1644, %v803
        %v1675 = vadd.f32 %v1644, %v890
        %v1676 = vadd.f32 %v1644, %v892
        %v1677 = vadd.f32 %v1648, %v801
        %v1678 = vadd.f32 %v1648, %v803
        %v1679 = vadd.f32 %v1648, %v890
        %v1680 = vadd.f32 %v1648, %v892
        %v1681 = vadd.f32 %v1652, %v801
        %v1682 = vadd.f32 %v1652, %v803
        %v1683 = vadd.f32 %v1652, %v890
        %v1684 = vadd.f32 %v1652, %v892
        %v1685 = vadd.f32 %v1656, %v801
        %v1686 = vadd.f32 %v1656, %v803
        %v1687 = vadd.f32 %v1656, %v890
        %v1688 = vadd.f32 %v1656, %v892
        %v1689 = vadd.f32 %v1660, %v801
        %v1690 = vadd.f32 %v1660, %v803
        %v1691 = vadd.f32 %v1660, %v890
        %v1692 = vadd.f32 %v1660, %v892
        %v1693 = vadd.f32 %v1664, %v801
        %v1694 = vadd.f32 %v1664, %v803
        %v1695 = vadd.f32 %v1664, %v890
        %v1696 = vadd.f32 %v1664, %v892
        %v1697 = vadd.f32 %v1668, %v801
        %v1698 = vadd.f32 %v1668, %v803
        %v1699 = vadd.f32 %v1668, %v890
        %v1700 = vadd.f32 %v1668, %v892
        %v1701 = vadd.f32 %v1672, %v801
        %v1702 = vadd.f32 %v1672, %v803
        %v1703 = vadd.f32 %v1672, %v890
        %v1704 = vadd.f32 %v1672, %v892
        %v1705 = vmax.f32 %v1673, 0.0
        %v1706 = vmax.f32 %v1674, 0.0
        %v1707 = vmax.f32 %v1675, 0.0
        %v1708 = vmax.f32 %v1676, 0.0
        %v1709 = vmax.f32 %v1677, 0.0
        %v1710 = vmax.f32 %v1678, 0.0
        %v1711 = vmax.f32 %v1679, 0.0
        %v1712 = vmax.f32 %v1680, 0.0
        %v1713 = vmax.f32 %v1681, 0.0
        %v1714 = vmax.f32 %v1682, 0.0
        %v1715 = vmax.f32 %v1683, 0.0
        %v1716 = vmax.f32 %v1684, 0.0
        %v1717 = vmax.f32 %v1685, 0.0
        %v1718 = vmax.f32 %v1686, 0.0
        %v1719 = vmax.f32 %v1687, 0.0
        %v1720 = vmax.f32 %v1688, 0.0
        %v1721 = vmax.f32 %v1689, 0.0
        %v1722 = vmax.f32 %v1690, 0.0
        %v1723 = vmax.f32 %v1691, 0.0
        %v1724 = vmax.f32 %v1692, 0.0
        %v1725 = vmax.f32 %v1693, 0.0
        %v1726 = vmax.f32 %v1694, 0.0
        %v1727 = vmax.f32 %v1695, 0.0
        %v1728 = vmax.f32 %v1696, 0.0
        %v1729 = vmax.f32 %v1697, 0.0
        %v1730 = vmax.f32 %v1698, 0.0
        %v1731 = vmax.f32 %v1699, 0.0
        %v1732 = vmax.f32 %v1700, 0.0
        %v1733 = vmax.f32 %v1701, 0.0
        %v1734 = vmax.f32 %v1702, 0.0
        %v1735 = vmax.f32 %v1703, 0.0
        %v1736 = vmax.f32 %v1704, 0.0
        %s1738 = sor.u32 256, 16
        %1739 = vbcast.lane.b32.xlu0 %v1025, %s1738
        %v1740 = vpop.permute.xlu0 %1739
        %v1741 = vmul.f32 %v1705, %v1740
        %v1742 = vmul.f32 %v1706, %v1740
        %v1743 = vmul.f32 %v1707, %v1740
        %v1744 = vmul.f32 %v1708, %v1740
        %v1745 = vmul.f32 %v1709, %v1740
        %v1746 = vmul.f32 %v1710, %v1740
        %v1747 = vmul.f32 %v1711, %v1740
        %v1748 = vmul.f32 %v1712, %v1740
        %v1749 = vmul.f32 %v1713, %v1740
        %v1750 = vmul.f32 %v1714, %v1740
        %v1751 = vmul.f32 %v1715, %v1740
        %v1752 = vmul.f32 %v1716, %v1740
        %v1753 = vmul.f32 %v1717, %v1740
        %v1754 = vmul.f32 %v1718, %v1740
        %v1755 = vmul.f32 %v1719, %v1740
        %v1756 = vmul.f32 %v1720, %v1740
        %v1757 = vmul.f32 %v1721, %v1740
        %v1758 = vmul.f32 %v1722, %v1740
        %v1759 = vmul.f32 %v1723, %v1740
        %v1760 = vmul.f32 %v1724, %v1740
        %v1761 = vmul.f32 %v1725, %v1740
        %v1762 = vmul.f32 %v1726, %v1740
        %v1763 = vmul.f32 %v1727, %v1740
        %v1764 = vmul.f32 %v1728, %v1740
        %v1765 = vmul.f32 %v1729, %v1740
        %v1766 = vmul.f32 %v1730, %v1740
        %v1767 = vmul.f32 %v1731, %v1740
        %v1768 = vmul.f32 %v1732, %v1740
        %v1769 = vmul.f32 %v1733, %v1740
        %v1770 = vmul.f32 %v1734, %v1740
        %v1771 = vmul.f32 %v1735, %v1740
        %v1772 = vmul.f32 %v1736, %v1740
        %v1773 = vrot.slane %v1741, 4
        %v1774 = vadd.f32 %v1741, %v1773
        %v1775 = vrot.slane %v1774, 2
        %v1776 = vadd.f32 %v1774, %v1775
        %v1777 = vrot.slane %v1776, 1
        %v1778 = vadd.f32 %v1776, %v1777
        %v1779 = vrot.slane %v1742, 4
        %v1780 = vadd.f32 %v1742, %v1779
        %v1781 = vrot.slane %v1780, 2
        %v1782 = vadd.f32 %v1780, %v1781
        %v1783 = vrot.slane %v1782, 1
        %v1784 = vadd.f32 %v1782, %v1783
        %v1785 = vrot.slane %v1743, 4
        %v1786 = vadd.f32 %v1743, %v1785
        %v1787 = vrot.slane %v1786, 2
        %v1788 = vadd.f32 %v1786, %v1787
        %v1789 = vrot.slane %v1788, 1
        %v1790 = vadd.f32 %v1788, %v1789
        %v1791 = vrot.slane %v1744, 4
        %v1792 = vadd.f32 %v1744, %v1791
        %v1793 = vrot.slane %v1792, 2
        %v1794 = vadd.f32 %v1792, %v1793
        %v1795 = vrot.slane %v1794, 1
        %v1796 = vadd.f32 %v1794, %v1795
        %v1797 = vrot.slane %v1745, 4
        %v1798 = vadd.f32 %v1745, %v1797
        %v1799 = vrot.slane %v1798, 2
        %v1800 = vadd.f32 %v1798, %v1799
        %v1801 = vrot.slane %v1800, 1
        %v1802 = vadd.f32 %v1800, %v1801
        %v1803 = vrot.slane %v1746, 4
        %v1804 = vadd.f32 %v1746, %v1803
        %v1805 = vrot.slane %v1804, 2
        %v1806 = vadd.f32 %v1804, %v1805
        %v1807 = vrot.slane %v1806, 1
        %v1808 = vadd.f32 %v1806, %v1807
        %v1809 = vrot.slane %v1747, 4
        %v1810 = vadd.f32 %v1747, %v1809
        %v1811 = vrot.slane %v1810, 2
        %v1812 = vadd.f32 %v1810, %v1811
        %v1813 = vrot.slane %v1812, 1
        %v1814 = vadd.f32 %v1812, %v1813
        %v1815 = vrot.slane %v1748, 4
        %v1816 = vadd.f32 %v1748, %v1815
        %v1817 = vrot.slane %v1816, 2
        %v1818 = vadd.f32 %v1816, %v1817
        %v1819 = vrot.slane %v1818, 1
        %v1820 = vadd.f32 %v1818, %v1819
        %v1821 = vrot.slane %v1749, 4
        %v1822 = vadd.f32 %v1749, %v1821
        %v1823 = vrot.slane %v1822, 2
        %v1824 = vadd.f32 %v1822, %v1823
        %v1825 = vrot.slane %v1824, 1
        %v1826 = vadd.f32 %v1824, %v1825
        %v1827 = vrot.slane %v1750, 4
        %v1828 = vadd.f32 %v1750, %v1827
        %v1829 = vrot.slane %v1828, 2
        %v1830 = vadd.f32 %v1828, %v1829
        %v1831 = vrot.slane %v1830, 1
        %v1832 = vadd.f32 %v1830, %v1831
        %v1833 = vrot.slane %v1751, 4
        %v1834 = vadd.f32 %v1751, %v1833
        %v1835 = vrot.slane %v1834, 2
        %v1836 = vadd.f32 %v1834, %v1835
        %v1837 = vrot.slane %v1836, 1
        %v1838 = vadd.f32 %v1836, %v1837
        %v1839 = vrot.slane %v1752, 4
        %v1840 = vadd.f32 %v1752, %v1839
        %v1841 = vrot.slane %v1840, 2
        %v1842 = vadd.f32 %v1840, %v1841
        %v1843 = vrot.slane %v1842, 1
        %v1844 = vadd.f32 %v1842, %v1843
        %v1845 = vrot.slane %v1753, 4
        %v1846 = vadd.f32 %v1753, %v1845
        %v1847 = vrot.slane %v1846, 2
        %v1848 = vadd.f32 %v1846, %v1847
        %v1849 = vrot.slane %v1848, 1
        %v1850 = vadd.f32 %v1848, %v1849
        %v1851 = vrot.slane %v1754, 4
        %v1852 = vadd.f32 %v1754, %v1851
        %v1853 = vrot.slane %v1852, 2
        %v1854 = vadd.f32 %v1852, %v1853
        %v1855 = vrot.slane %v1854, 1
        %v1856 = vadd.f32 %v1854, %v1855
        %v1857 = vrot.slane %v1755, 4
        %v1858 = vadd.f32 %v1755, %v1857
        %v1859 = vrot.slane %v1858, 2
        %v1860 = vadd.f32 %v1858, %v1859
        %v1861 = vrot.slane %v1860, 1
        %v1862 = vadd.f32 %v1860, %v1861
        %v1863 = vrot.slane %v1756, 4
        %v1864 = vadd.f32 %v1756, %v1863
        %v1865 = vrot.slane %v1864, 2
        %v1866 = vadd.f32 %v1864, %v1865
        %v1867 = vrot.slane %v1866, 1
        %v1868 = vadd.f32 %v1866, %v1867
        %v1869 = vrot.slane %v1757, 4
        %v1870 = vadd.f32 %v1757, %v1869
        %v1871 = vrot.slane %v1870, 2
        %v1872 = vadd.f32 %v1870, %v1871
        %v1873 = vrot.slane %v1872, 1
        %v1874 = vadd.f32 %v1872, %v1873
        %v1875 = vrot.slane %v1758, 4
        %v1876 = vadd.f32 %v1758, %v1875
        %v1877 = vrot.slane %v1876, 2
        %v1878 = vadd.f32 %v1876, %v1877
        %v1879 = vrot.slane %v1878, 1
        %v1880 = vadd.f32 %v1878, %v1879
        %v1881 = vrot.slane %v1759, 4
        %v1882 = vadd.f32 %v1759, %v1881
        %v1883 = vrot.slane %v1882, 2
        %v1884 = vadd.f32 %v1882, %v1883
        %v1885 = vrot.slane %v1884, 1
        %v1886 = vadd.f32 %v1884, %v1885
        %v1887 = vrot.slane %v1760, 4
        %v1888 = vadd.f32 %v1760, %v1887
        %v1889 = vrot.slane %v1888, 2
        %v1890 = vadd.f32 %v1888, %v1889
        %v1891 = vrot.slane %v1890, 1
        %v1892 = vadd.f32 %v1890, %v1891
        %v1893 = vrot.slane %v1761, 4
        %v1894 = vadd.f32 %v1761, %v1893
        %v1895 = vrot.slane %v1894, 2
        %v1896 = vadd.f32 %v1894, %v1895
        %v1897 = vrot.slane %v1896, 1
        %v1898 = vadd.f32 %v1896, %v1897
        %v1899 = vrot.slane %v1762, 4
        %v1900 = vadd.f32 %v1762, %v1899
        %v1901 = vrot.slane %v1900, 2
        %v1902 = vadd.f32 %v1900, %v1901
        %v1903 = vrot.slane %v1902, 1
        %v1904 = vadd.f32 %v1902, %v1903
        %v1905 = vrot.slane %v1763, 4
        %v1906 = vadd.f32 %v1763, %v1905
        %v1907 = vrot.slane %v1906, 2
        %v1908 = vadd.f32 %v1906, %v1907
        %v1909 = vrot.slane %v1908, 1
        %v1910 = vadd.f32 %v1908, %v1909
        %v1911 = vrot.slane %v1764, 4
        %v1912 = vadd.f32 %v1764, %v1911
        %v1913 = vrot.slane %v1912, 2
        %v1914 = vadd.f32 %v1912, %v1913
        %v1915 = vrot.slane %v1914, 1
        %v1916 = vadd.f32 %v1914, %v1915
        %v1917 = vrot.slane %v1765, 4
        %v1918 = vadd.f32 %v1765, %v1917
        %v1919 = vrot.slane %v1918, 2
        %v1920 = vadd.f32 %v1918, %v1919
        %v1921 = vrot.slane %v1920, 1
        %v1922 = vadd.f32 %v1920, %v1921
        %v1923 = vrot.slane %v1766, 4
        %v1924 = vadd.f32 %v1766, %v1923
        %v1925 = vrot.slane %v1924, 2
        %v1926 = vadd.f32 %v1924, %v1925
        %v1927 = vrot.slane %v1926, 1
        %v1928 = vadd.f32 %v1926, %v1927
        %v1929 = vrot.slane %v1767, 4
        %v1930 = vadd.f32 %v1767, %v1929
        %v1931 = vrot.slane %v1930, 2
        %v1932 = vadd.f32 %v1930, %v1931
        %v1933 = vrot.slane %v1932, 1
        %v1934 = vadd.f32 %v1932, %v1933
        %v1935 = vrot.slane %v1768, 4
        %v1936 = vadd.f32 %v1768, %v1935
        %v1937 = vrot.slane %v1936, 2
        %v1938 = vadd.f32 %v1936, %v1937
        %v1939 = vrot.slane %v1938, 1
        %v1940 = vadd.f32 %v1938, %v1939
        %v1941 = vrot.slane %v1769, 4
        %v1942 = vadd.f32 %v1769, %v1941
        %v1943 = vrot.slane %v1942, 2
        %v1944 = vadd.f32 %v1942, %v1943
        %v1945 = vrot.slane %v1944, 1
        %v1946 = vadd.f32 %v1944, %v1945
        %v1947 = vrot.slane %v1770, 4
        %v1948 = vadd.f32 %v1770, %v1947
        %v1949 = vrot.slane %v1948, 2
        %v1950 = vadd.f32 %v1948, %v1949
        %v1951 = vrot.slane %v1950, 1
        %v1952 = vadd.f32 %v1950, %v1951
        %v1953 = vrot.slane %v1771, 4
        %v1954 = vadd.f32 %v1771, %v1953
        %v1955 = vrot.slane %v1954, 2
        %v1956 = vadd.f32 %v1954, %v1955
        %v1957 = vrot.slane %v1956, 1
        %v1958 = vadd.f32 %v1956, %v1957
        %v1959 = vrot.slane %v1772, 4
        %v1960 = vadd.f32 %v1772, %v1959
        %v1961 = vrot.slane %v1960, 2
        %v1962 = vadd.f32 %v1960, %v1961
        %v1963 = vrot.slane %v1962, 1
        %v1964 = vadd.f32 %v1962, %v1963
        %v1965 = vadd.f32 %v1609, %v1778
        %v1966 = vadd.f32 %v1610, %v1784
        %v1967 = vadd.f32 %v1611, %v1790
        %v1968 = vadd.f32 %v1612, %v1796
        %v1969 = vadd.f32 %v1613, %v1802
        %v1970 = vadd.f32 %v1614, %v1808
        %v1971 = vadd.f32 %v1615, %v1814
        %v1972 = vadd.f32 %v1616, %v1820
        %v1973 = vadd.f32 %v1617, %v1826
        %v1974 = vadd.f32 %v1618, %v1832
        %v1975 = vadd.f32 %v1619, %v1838
        %v1976 = vadd.f32 %v1620, %v1844
        %v1977 = vadd.f32 %v1621, %v1850
        %v1978 = vadd.f32 %v1622, %v1856
        %v1979 = vadd.f32 %v1623, %v1862
        %v1980 = vadd.f32 %v1624, %v1868
        %v1981 = vadd.f32 %v1625, %v1874
        %v1982 = vadd.f32 %v1626, %v1880
        %v1983 = vadd.f32 %v1627, %v1886
        %v1984 = vadd.f32 %v1628, %v1892
        %v1985 = vadd.f32 %v1629, %v1898
        %v1986 = vadd.f32 %v1630, %v1904
        %v1987 = vadd.f32 %v1631, %v1910
        %v1988 = vadd.f32 %v1632, %v1916
        %v1989 = vadd.f32 %v1633, %v1922
        %v1990 = vadd.f32 %v1634, %v1928
        %v1991 = vadd.f32 %v1635, %v1934
        %v1992 = vadd.f32 %v1636, %v1940
        %v1993 = vadd.f32 %v1637, %v1946
        %v1994 = vadd.f32 %v1638, %v1952
        %v1995 = vadd.f32 %v1639, %v1958
        %v1996 = vadd.f32 %v1640, %v1964
        %s1998 = sor.u32 256, 24
        %1999 = vbcast.lane.b32.xlu0 %v905, %s1998
        %v2000 = vpop.permute.xlu0 %1999
        %s2002 = sor.u32 256, 24
        %2003 = vbcast.lane.b32.xlu0 %v912, %s2002
        %v2004 = vpop.permute.xlu0 %2003
        %s2006 = sor.u32 256, 24
        %2007 = vbcast.lane.b32.xlu0 %v919, %s2006
        %v2008 = vpop.permute.xlu0 %2007
        %s2010 = sor.u32 256, 24
        %2011 = vbcast.lane.b32.xlu0 %v926, %s2010
        %v2012 = vpop.permute.xlu0 %2011
        %s2014 = sor.u32 256, 24
        %2015 = vbcast.lane.b32.xlu0 %v933, %s2014
        %v2016 = vpop.permute.xlu0 %2015
        %s2018 = sor.u32 256, 24
        %2019 = vbcast.lane.b32.xlu0 %v940, %s2018
        %v2020 = vpop.permute.xlu0 %2019
        %s2022 = sor.u32 256, 24
        %2023 = vbcast.lane.b32.xlu0 %v947, %s2022
        %v2024 = vpop.permute.xlu0 %2023
        %s2026 = sor.u32 256, 24
        %2027 = vbcast.lane.b32.xlu0 %v954, %s2026
        %v2028 = vpop.permute.xlu0 %2027
        %v2029 = vadd.f32 %v2000, %v807
        %v2030 = vadd.f32 %v2000, %v809
        %v2031 = vadd.f32 %v2000, %v896
        %v2032 = vadd.f32 %v2000, %v898
        %v2033 = vadd.f32 %v2004, %v807
        %v2034 = vadd.f32 %v2004, %v809
        %v2035 = vadd.f32 %v2004, %v896
        %v2036 = vadd.f32 %v2004, %v898
        %v2037 = vadd.f32 %v2008, %v807
        %v2038 = vadd.f32 %v2008, %v809
        %v2039 = vadd.f32 %v2008, %v896
        %v2040 = vadd.f32 %v2008, %v898
        %v2041 = vadd.f32 %v2012, %v807
        %v2042 = vadd.f32 %v2012, %v809
        %v2043 = vadd.f32 %v2012, %v896
        %v2044 = vadd.f32 %v2012, %v898
        %v2045 = vadd.f32 %v2016, %v807
        %v2046 = vadd.f32 %v2016, %v809
        %v2047 = vadd.f32 %v2016, %v896
        %v2048 = vadd.f32 %v2016, %v898
        %v2049 = vadd.f32 %v2020, %v807
        %v2050 = vadd.f32 %v2020, %v809
        %v2051 = vadd.f32 %v2020, %v896
        %v2052 = vadd.f32 %v2020, %v898
        %v2053 = vadd.f32 %v2024, %v807
        %v2054 = vadd.f32 %v2024, %v809
        %v2055 = vadd.f32 %v2024, %v896
        %v2056 = vadd.f32 %v2024, %v898
        %v2057 = vadd.f32 %v2028, %v807
        %v2058 = vadd.f32 %v2028, %v809
        %v2059 = vadd.f32 %v2028, %v896
        %v2060 = vadd.f32 %v2028, %v898
        %v2061 = vmax.f32 %v2029, 0.0
        %v2062 = vmax.f32 %v2030, 0.0
        %v2063 = vmax.f32 %v2031, 0.0
        %v2064 = vmax.f32 %v2032, 0.0
        %v2065 = vmax.f32 %v2033, 0.0
        %v2066 = vmax.f32 %v2034, 0.0
        %v2067 = vmax.f32 %v2035, 0.0
        %v2068 = vmax.f32 %v2036, 0.0
        %v2069 = vmax.f32 %v2037, 0.0
        %v2070 = vmax.f32 %v2038, 0.0
        %v2071 = vmax.f32 %v2039, 0.0
        %v2072 = vmax.f32 %v2040, 0.0
        %v2073 = vmax.f32 %v2041, 0.0
        %v2074 = vmax.f32 %v2042, 0.0
        %v2075 = vmax.f32 %v2043, 0.0
        %v2076 = vmax.f32 %v2044, 0.0
        %v2077 = vmax.f32 %v2045, 0.0
        %v2078 = vmax.f32 %v2046, 0.0
        %v2079 = vmax.f32 %v2047, 0.0
        %v2080 = vmax.f32 %v2048, 0.0
        %v2081 = vmax.f32 %v2049, 0.0
        %v2082 = vmax.f32 %v2050, 0.0
        %v2083 = vmax.f32 %v2051, 0.0
        %v2084 = vmax.f32 %v2052, 0.0
        %v2085 = vmax.f32 %v2053, 0.0
        %v2086 = vmax.f32 %v2054, 0.0
        %v2087 = vmax.f32 %v2055, 0.0
        %v2088 = vmax.f32 %v2056, 0.0
        %v2089 = vmax.f32 %v2057, 0.0
        %v2090 = vmax.f32 %v2058, 0.0
        %v2091 = vmax.f32 %v2059, 0.0
        %v2092 = vmax.f32 %v2060, 0.0
        %s2094 = sor.u32 256, 24
        %2095 = vbcast.lane.b32.xlu0 %v1025, %s2094
        %v2096 = vpop.permute.xlu0 %2095
        %v2097 = vmul.f32 %v2061, %v2096
        %v2098 = vmul.f32 %v2062, %v2096
        %v2099 = vmul.f32 %v2063, %v2096
        %v2100 = vmul.f32 %v2064, %v2096
        %v2101 = vmul.f32 %v2065, %v2096
        %v2102 = vmul.f32 %v2066, %v2096
        %v2103 = vmul.f32 %v2067, %v2096
        %v2104 = vmul.f32 %v2068, %v2096
        %v2105 = vmul.f32 %v2069, %v2096
        %v2106 = vmul.f32 %v2070, %v2096
        %v2107 = vmul.f32 %v2071, %v2096
        %v2108 = vmul.f32 %v2072, %v2096
        %v2109 = vmul.f32 %v2073, %v2096
        %v2110 = vmul.f32 %v2074, %v2096
        %v2111 = vmul.f32 %v2075, %v2096
        %v2112 = vmul.f32 %v2076, %v2096
        %v2113 = vmul.f32 %v2077, %v2096
        %v2114 = vmul.f32 %v2078, %v2096
        %v2115 = vmul.f32 %v2079, %v2096
        %v2116 = vmul.f32 %v2080, %v2096
        %v2117 = vmul.f32 %v2081, %v2096
        %v2118 = vmul.f32 %v2082, %v2096
        %v2119 = vmul.f32 %v2083, %v2096
        %v2120 = vmul.f32 %v2084, %v2096
        %v2121 = vmul.f32 %v2085, %v2096
        %v2122 = vmul.f32 %v2086, %v2096
        %v2123 = vmul.f32 %v2087, %v2096
        %v2124 = vmul.f32 %v2088, %v2096
        %v2125 = vmul.f32 %v2089, %v2096
        %v2126 = vmul.f32 %v2090, %v2096
        %v2127 = vmul.f32 %v2091, %v2096
        %v2128 = vmul.f32 %v2092, %v2096
        %v2129 = vrot.slane %v2097, 4
        %v2130 = vadd.f32 %v2097, %v2129
        %v2131 = vrot.slane %v2130, 2
        %v2132 = vadd.f32 %v2130, %v2131
        %v2133 = vrot.slane %v2132, 1
        %v2134 = vadd.f32 %v2132, %v2133
        %v2135 = vrot.slane %v2098, 4
        %v2136 = vadd.f32 %v2098, %v2135
        %v2137 = vrot.slane %v2136, 2
        %v2138 = vadd.f32 %v2136, %v2137
        %v2139 = vrot.slane %v2138, 1
        %v2140 = vadd.f32 %v2138, %v2139
        %v2141 = vrot.slane %v2099, 4
        %v2142 = vadd.f32 %v2099, %v2141
        %v2143 = vrot.slane %v2142, 2
        %v2144 = vadd.f32 %v2142, %v2143
        %v2145 = vrot.slane %v2144, 1
        %v2146 = vadd.f32 %v2144, %v2145
        %v2147 = vrot.slane %v2100, 4
        %v2148 = vadd.f32 %v2100, %v2147
        %v2149 = vrot.slane %v2148, 2
        %v2150 = vadd.f32 %v2148, %v2149
        %v2151 = vrot.slane %v2150, 1
        %v2152 = vadd.f32 %v2150, %v2151
        %v2153 = vrot.slane %v2101, 4
        %v2154 = vadd.f32 %v2101, %v2153
        %v2155 = vrot.slane %v2154, 2
        %v2156 = vadd.f32 %v2154, %v2155
        %v2157 = vrot.slane %v2156, 1
        %v2158 = vadd.f32 %v2156, %v2157
        %v2159 = vrot.slane %v2102, 4
        %v2160 = vadd.f32 %v2102, %v2159
        %v2161 = vrot.slane %v2160, 2
        %v2162 = vadd.f32 %v2160, %v2161
        %v2163 = vrot.slane %v2162, 1
        %v2164 = vadd.f32 %v2162, %v2163
        %v2165 = vrot.slane %v2103, 4
        %v2166 = vadd.f32 %v2103, %v2165
        %v2167 = vrot.slane %v2166, 2
        %v2168 = vadd.f32 %v2166, %v2167
        %v2169 = vrot.slane %v2168, 1
        %v2170 = vadd.f32 %v2168, %v2169
        %v2171 = vrot.slane %v2104, 4
        %v2172 = vadd.f32 %v2104, %v2171
        %v2173 = vrot.slane %v2172, 2
        %v2174 = vadd.f32 %v2172, %v2173
        %v2175 = vrot.slane %v2174, 1
        %v2176 = vadd.f32 %v2174, %v2175
        %v2177 = vrot.slane %v2105, 4
        %v2178 = vadd.f32 %v2105, %v2177
        %v2179 = vrot.slane %v2178, 2
        %v2180 = vadd.f32 %v2178, %v2179
        %v2181 = vrot.slane %v2180, 1
        %v2182 = vadd.f32 %v2180, %v2181
        %v2183 = vrot.slane %v2106, 4
        %v2184 = vadd.f32 %v2106, %v2183
        %v2185 = vrot.slane %v2184, 2
        %v2186 = vadd.f32 %v2184, %v2185
        %v2187 = vrot.slane %v2186, 1
        %v2188 = vadd.f32 %v2186, %v2187
        %v2189 = vrot.slane %v2107, 4
        %v2190 = vadd.f32 %v2107, %v2189
        %v2191 = vrot.slane %v2190, 2
        %v2192 = vadd.f32 %v2190, %v2191
        %v2193 = vrot.slane %v2192, 1
        %v2194 = vadd.f32 %v2192, %v2193
        %v2195 = vrot.slane %v2108, 4
        %v2196 = vadd.f32 %v2108, %v2195
        %v2197 = vrot.slane %v2196, 2
        %v2198 = vadd.f32 %v2196, %v2197
        %v2199 = vrot.slane %v2198, 1
        %v2200 = vadd.f32 %v2198, %v2199
        %v2201 = vrot.slane %v2109, 4
        %v2202 = vadd.f32 %v2109, %v2201
        %v2203 = vrot.slane %v2202, 2
        %v2204 = vadd.f32 %v2202, %v2203
        %v2205 = vrot.slane %v2204, 1
        %v2206 = vadd.f32 %v2204, %v2205
        %v2207 = vrot.slane %v2110, 4
        %v2208 = vadd.f32 %v2110, %v2207
        %v2209 = vrot.slane %v2208, 2
        %v2210 = vadd.f32 %v2208, %v2209
        %v2211 = vrot.slane %v2210, 1
        %v2212 = vadd.f32 %v2210, %v2211
        %v2213 = vrot.slane %v2111, 4
        %v2214 = vadd.f32 %v2111, %v2213
        %v2215 = vrot.slane %v2214, 2
        %v2216 = vadd.f32 %v2214, %v2215
        %v2217 = vrot.slane %v2216, 1
        %v2218 = vadd.f32 %v2216, %v2217
        %v2219 = vrot.slane %v2112, 4
        %v2220 = vadd.f32 %v2112, %v2219
        %v2221 = vrot.slane %v2220, 2
        %v2222 = vadd.f32 %v2220, %v2221
        %v2223 = vrot.slane %v2222, 1
        %v2224 = vadd.f32 %v2222, %v2223
        %v2225 = vrot.slane %v2113, 4
        %v2226 = vadd.f32 %v2113, %v2225
        %v2227 = vrot.slane %v2226, 2
        %v2228 = vadd.f32 %v2226, %v2227
        %v2229 = vrot.slane %v2228, 1
        %v2230 = vadd.f32 %v2228, %v2229
        %v2231 = vrot.slane %v2114, 4
        %v2232 = vadd.f32 %v2114, %v2231
        %v2233 = vrot.slane %v2232, 2
        %v2234 = vadd.f32 %v2232, %v2233
        %v2235 = vrot.slane %v2234, 1
        %v2236 = vadd.f32 %v2234, %v2235
        %v2237 = vrot.slane %v2115, 4
        %v2238 = vadd.f32 %v2115, %v2237
        %v2239 = vrot.slane %v2238, 2
        %v2240 = vadd.f32 %v2238, %v2239
        %v2241 = vrot.slane %v2240, 1
        %v2242 = vadd.f32 %v2240, %v2241
        %v2243 = vrot.slane %v2116, 4
        %v2244 = vadd.f32 %v2116, %v2243
        %v2245 = vrot.slane %v2244, 2
        %v2246 = vadd.f32 %v2244, %v2245
        %v2247 = vrot.slane %v2246, 1
        %v2248 = vadd.f32 %v2246, %v2247
        %v2249 = vrot.slane %v2117, 4
        %v2250 = vadd.f32 %v2117, %v2249
        %v2251 = vrot.slane %v2250, 2
        %v2252 = vadd.f32 %v2250, %v2251
        %v2253 = vrot.slane %v2252, 1
        %v2254 = vadd.f32 %v2252, %v2253
        %v2255 = vrot.slane %v2118, 4
        %v2256 = vadd.f32 %v2118, %v2255
        %v2257 = vrot.slane %v2256, 2
        %v2258 = vadd.f32 %v2256, %v2257
        %v2259 = vrot.slane %v2258, 1
        %v2260 = vadd.f32 %v2258, %v2259
        %v2261 = vrot.slane %v2119, 4
        %v2262 = vadd.f32 %v2119, %v2261
        %v2263 = vrot.slane %v2262, 2
        %v2264 = vadd.f32 %v2262, %v2263
        %v2265 = vrot.slane %v2264, 1
        %v2266 = vadd.f32 %v2264, %v2265
        %v2267 = vrot.slane %v2120, 4
        %v2268 = vadd.f32 %v2120, %v2267
        %v2269 = vrot.slane %v2268, 2
        %v2270 = vadd.f32 %v2268, %v2269
        %v2271 = vrot.slane %v2270, 1
        %v2272 = vadd.f32 %v2270, %v2271
        %v2273 = vrot.slane %v2121, 4
        %v2274 = vadd.f32 %v2121, %v2273
        %v2275 = vrot.slane %v2274, 2
        %v2276 = vadd.f32 %v2274, %v2275
        %v2277 = vrot.slane %v2276, 1
        %v2278 = vadd.f32 %v2276, %v2277
        %v2279 = vrot.slane %v2122, 4
        %v2280 = vadd.f32 %v2122, %v2279
        %v2281 = vrot.slane %v2280, 2
        %v2282 = vadd.f32 %v2280, %v2281
        %v2283 = vrot.slane %v2282, 1
        %v2284 = vadd.f32 %v2282, %v2283
        %v2285 = vrot.slane %v2123, 4
        %v2286 = vadd.f32 %v2123, %v2285
        %v2287 = vrot.slane %v2286, 2
        %v2288 = vadd.f32 %v2286, %v2287
        %v2289 = vrot.slane %v2288, 1
        %v2290 = vadd.f32 %v2288, %v2289
        %v2291 = vrot.slane %v2124, 4
        %v2292 = vadd.f32 %v2124, %v2291
        %v2293 = vrot.slane %v2292, 2
        %v2294 = vadd.f32 %v2292, %v2293
        %v2295 = vrot.slane %v2294, 1
        %v2296 = vadd.f32 %v2294, %v2295
        %v2297 = vrot.slane %v2125, 4
        %v2298 = vadd.f32 %v2125, %v2297
        %v2299 = vrot.slane %v2298, 2
        %v2300 = vadd.f32 %v2298, %v2299
        %v2301 = vrot.slane %v2300, 1
        %v2302 = vadd.f32 %v2300, %v2301
        %v2303 = vrot.slane %v2126, 4
        %v2304 = vadd.f32 %v2126, %v2303
        %v2305 = vrot.slane %v2304, 2
        %v2306 = vadd.f32 %v2304, %v2305
        %v2307 = vrot.slane %v2306, 1
        %v2308 = vadd.f32 %v2306, %v2307
        %v2309 = vrot.slane %v2127, 4
        %v2310 = vadd.f32 %v2127, %v2309
        %v2311 = vrot.slane %v2310, 2
        %v2312 = vadd.f32 %v2310, %v2311
        %v2313 = vrot.slane %v2312, 1
        %v2314 = vadd.f32 %v2312, %v2313
        %v2315 = vrot.slane %v2128, 4
        %v2316 = vadd.f32 %v2128, %v2315
        %v2317 = vrot.slane %v2316, 2
        %v2318 = vadd.f32 %v2316, %v2317
        %v2319 = vrot.slane %v2318, 1
        %v2320 = vadd.f32 %v2318, %v2319
        %v2321 = vadd.f32 %v1965, %v2134
        %v2322 = vadd.f32 %v1966, %v2140
        %v2323 = vadd.f32 %v1967, %v2146
        %v2324 = vadd.f32 %v1968, %v2152
        %v2325 = vadd.f32 %v1969, %v2158
        %v2326 = vadd.f32 %v1970, %v2164
        %v2327 = vadd.f32 %v1971, %v2170
        %v2328 = vadd.f32 %v1972, %v2176
        %v2329 = vadd.f32 %v1973, %v2182
        %v2330 = vadd.f32 %v1974, %v2188
        %v2331 = vadd.f32 %v1975, %v2194
        %v2332 = vadd.f32 %v1976, %v2200
        %v2333 = vadd.f32 %v1977, %v2206
        %v2334 = vadd.f32 %v1978, %v2212
        %v2335 = vadd.f32 %v1979, %v2218
        %v2336 = vadd.f32 %v1980, %v2224
        %v2337 = vadd.f32 %v1981, %v2230
        %v2338 = vadd.f32 %v1982, %v2236
        %v2339 = vadd.f32 %v1983, %v2242
        %v2340 = vadd.f32 %v1984, %v2248
        %v2341 = vadd.f32 %v1985, %v2254
        %v2342 = vadd.f32 %v1986, %v2260
        %v2343 = vadd.f32 %v1987, %v2266
        %v2344 = vadd.f32 %v1988, %v2272
        %v2345 = vadd.f32 %v1989, %v2278
        %v2346 = vadd.f32 %v1990, %v2284
        %v2347 = vadd.f32 %v1991, %v2290
        %v2348 = vadd.f32 %v1992, %v2296
        %v2349 = vadd.f32 %v1993, %v2302
        %v2350 = vadd.f32 %v1994, %v2308
        %v2351 = vadd.f32 %v1995, %v2314
        %v2352 = vadd.f32 %v1996, %v2320
        %s2353 = sld [smem:[#allocation3]]
        %v2354 = vstv %s2353
        %v2355 = vadd.f32 %v2321, %v2354
        %v2356 = vadd.f32 %v2322, %v2354
        %v2357 = vadd.f32 %v2323, %v2354
        %v2358 = vadd.f32 %v2324, %v2354
        %v2359 = vadd.f32 %v2325, %v2354
        %v2360 = vadd.f32 %v2326, %v2354
        %v2361 = vadd.f32 %v2327, %v2354
        %v2362 = vadd.f32 %v2328, %v2354
        %v2363 = vadd.f32 %v2329, %v2354
        %v2364 = vadd.f32 %v2330, %v2354
        %v2365 = vadd.f32 %v2331, %v2354
        %v2366 = vadd.f32 %v2332, %v2354
        %v2367 = vadd.f32 %v2333, %v2354
        %v2368 = vadd.f32 %v2334, %v2354
        %v2369 = vadd.f32 %v2335, %v2354
        %v2370 = vadd.f32 %v2336, %v2354
        %v2371 = vadd.f32 %v2337, %v2354
        %v2372 = vadd.f32 %v2338, %v2354
        %v2373 = vadd.f32 %v2339, %v2354
        %v2374 = vadd.f32 %v2340, %v2354
        %v2375 = vadd.f32 %v2341, %v2354
        %v2376 = vadd.f32 %v2342, %v2354
        %v2377 = vadd.f32 %v2343, %v2354
        %v2378 = vadd.f32 %v2344, %v2354
        %v2379 = vadd.f32 %v2345, %v2354
        %v2380 = vadd.f32 %v2346, %v2354
        %v2381 = vadd.f32 %v2347, %v2354
        %v2382 = vadd.f32 %v2348, %v2354
        %v2383 = vadd.f32 %v2349, %v2354
        %v2384 = vadd.f32 %v2350, %v2354
        %v2385 = vadd.f32 %v2351, %v2354
        %v2386 = vadd.f32 %v2352, %v2354
        %vm2419 = vcmask 1041409
        %v2420 = vsel %vm2419, %v2359, %v2355
        %vm2421 = vcmask 1042434
        %v2422 = vsel %vm2421, %v2363, %v2420
        %vm2423 = vcmask 1043459
        %v2424 = vsel %vm2423, %v2367, %v2422
        %vm2425 = vcmask 1044484
        %v2426 = vsel %vm2425, %v2371, %v2424
        %vm2427 = vcmask 1045509
        %v2428 = vsel %vm2427, %v2375, %v2426
        %vm2429 = vcmask 1046534
        %v2430 = vsel %vm2429, %v2379, %v2428
        %vm2431 = vcmask 1047559
        %v2432 = vsel %vm2431, %v2383, %v2430
        %v2433 = vsel %vm2419, %v2360, %v2356
        %v2434 = vsel %vm2421, %v2364, %v2433
        %v2435 = vsel %vm2423, %v2368, %v2434
        %v2436 = vsel %vm2425, %v2372, %v2435
        %v2437 = vsel %vm2427, %v2376, %v2436
        %v2438 = vsel %vm2429, %v2380, %v2437
        %v2439 = vsel %vm2431, %v2384, %v2438
        %v2440 = vsel %vm2419, %v2361, %v2357
        %v2441 = vsel %vm2421, %v2365, %v2440
        %v2442 = vsel %vm2423, %v2369, %v2441
        %v2443 = vsel %vm2425, %v2373, %v2442
        %v2444 = vsel %vm2427, %v2377, %v2443
        %v2445 = vsel %vm2429, %v2381, %v2444
        %v2446 = vsel %vm2431, %v2385, %v2445
        %v2447 = vsel %vm2419, %v2362, %v2358
        %v2448 = vsel %vm2421, %v2366, %v2447
        %v2449 = vsel %vm2423, %v2370, %v2448
        %v2450 = vsel %vm2425, %v2374, %v2449
        %v2451 = vsel %vm2427, %v2378, %v2450
        %v2452 = vsel %vm2429, %v2382, %v2451
        %v2453 = vsel %vm2431, %v2386, %v2452
        %2458 = vst [vmem:[%s327] sm:$0xff] %v2432
        %2459 = vst [vmem:[%s327 + $0x8] sm:$0xff] %v2439
        %2460 = vst [vmem:[%s327 + $0x10] sm:$0xff] %v2446
        %2461 = vst [vmem:[%s327 + $0x18] sm:$0xff] %v2453
        %s2462 = sand.u32 %s214, 1
        %s2463 = scalar_lea.sflag [#allocation5], %s2462
        %s2464 = sand.u32 %s214, 1
        %s2465 = smul.addr %s2464, 32
        %s2466 = scalar_lea.vmem [#allocation4], %s2465
        // Predicated region
        $region53: #{tpu_custom_call.1} parent=47 // pred_check
          %p2467 = pneg %p224
        $region54: #{tpu_custom_call.1} parent=47 // pred_check_branch
          %2469 = sbr.rel (%p2467) target = $region56
        $region55: #{tpu_custom_call.1} parent=47 // pred_region
          %s2470 = smul.u32 4, %s29
          %s2472 = ssub.s32 512, 512
          %2473 = vsyncadd %s2463, %s2472
          %s2474 = smul.addr %s28, 4
          %s2475 = sadd.s32 %s2470, %s2474
          %s2476 = smul.addr %s27, 4
          %s2477 = sadd.s32 %s2475, %s2476
          %s2478 = smul.addr %s2477, 128
          %s2479 = scalar_lea.hbm %s7, %s2478
          %s2481 = sshll.u32 %s2466, 4
          %s2482 = int_to_ptr.vmem [resolvable:$true] %s2481
          %2484 = dma.vmem_to_hbm [thread:$0]  %s2482, 512, %s2479, %s2463
        $region56: #{tpu_custom_call.1} parent=47 // pred_fallthru
          _
      $region48: #{tpu_custom_call.1} parent=5 // pred_fallthru
        _
      %p2485 = scmp.le.s32.totalorder 2, %s17
      // Predicated region
      $region57: #{tpu_custom_call.1} parent=5 // pred_check
        %p2486 = pneg %p2485
      $region58: #{tpu_custom_call.1} parent=5 // pred_check_branch
        %2488 = sbr.rel (%p2486) target = $region60
      $region59: #{tpu_custom_call.1} parent=5 // pred_region
        %s2489 = ssub.s32 %s17, 2
        // Predicated region
        $region61: #{tpu_custom_call.1} parent=59 // pred_check
          %p2490 = pneg %p230
        $region62: #{tpu_custom_call.1} parent=59 // pred_check_branch
          %2492 = sbr.rel (%p2490) target = $region64
        $region63: #{tpu_custom_call.1} parent=59 // pred_region
          %s2493 = sand.u32 %s215, 1
          %s2494 = scalar_lea.sflag [#allocation5], %s2493
          %s2495 = sand.u32 %s215, 1
          %s2496 = smul.addr %s2495, 32
          %s2497 = scalar_lea.vmem [#allocation4], %s2496
          %2498 = dma.done %s2494, 512
        $region64: #{tpu_custom_call.1} parent=59 // pred_fallthru
          _
      $region60: #{tpu_custom_call.1} parent=5 // pred_fallthru
        _
    $region6: #{tpu_custom_call.1} parent=1 // loop_footer
      %s21 = sadd.s32 1, %s17
    $region7: #{tpu_custom_call.1} parent=1 // loop_footer_branch
      %16 = sbr.rel target = $region3
    $region8: #{tpu_custom_call.1} parent=1 // loop_exit
      _
    %2499 = vsyncpa [#allocation5], 1
    %s2500 = scalar_lea.sflag [#allocation5], 1
    %2501 = vsyncpa %s2500, 1

</llo_original>
